<compile_context>
chip_gen: v7x
topology: tpu7x:2x2x1
jax: 0.10.0
libtpu: 0.0.40
codegen_flags: <defaults>
</compile_context>

<pallas_src>
import jax
import jax.numpy as jnp
import numpy as np
from jax import lax
from jax.experimental import pallas as pl
from jax.experimental.pallas import tpu as pltpu

EPS = 1e-5


# --------------------------- banded weight building ------------------------- #

def _col_block_map(s, w_size):
    """Map a (possibly out-of-range) source w position to a column block.

    Valid data occupies blocks 0..W-1; blocks W and W+1 are all-zero padding
    blocks (used for source positions w == W and w == -1 respectively).
    """
    if s < 0:
        return w_size + 1
    if s >= w_size:
        return w_size
    return s


def _banded_conv_weights(w_hwio, w_size):
    """(3,3,Ci,Co) HWIO conv weights -> (3, (W+2)*Ci, W*Co) banded GEMM mats.

    B[dh][s*Ci + ci, w*Co + co] == w_hwio[dh, kw, ci, co] whenever padded
    column block s corresponds to source position w + kw - 1.
    """
    _, _, ci, co = w_hwio.shape
    e = np.zeros((3, w_size, w_size + 2), np.float32)
    for kw in range(3):
        for w in range(w_size):
            e[kw, w, _col_block_map(w + kw - 1, w_size)] = 1.0
    # Pure 0/1 placement of the original weights -> keep it exact (this is
    # one-off weight preprocessing, not the in-kernel hot path).
    b = jnp.einsum("kws,dkio->dsiwo", jnp.asarray(e), w_hwio,
                   precision=lax.Precision.HIGHEST)
    return b.reshape(3, (w_size + 2) * ci, w_size * co)


def _blockdiag_1x1_weights(wsk, w_size):
    """(Ci, Co) 1x1-conv weights -> (W*Ci, W*Co) block-diagonal GEMM matrix."""
    ci, co = wsk.shape
    eye = jnp.eye(w_size, dtype=wsk.dtype)
    b = jnp.einsum("sw,io->siwo", eye, wsk, precision=lax.Precision.HIGHEST)
    return b.reshape(w_size * ci, w_size * co)


def _tile_per_channel(v, w_size):
    """(C,) per-channel vector -> (1, W*C) row matching the w*C + c lane order."""
    return jnp.tile(v.reshape(1, -1), (1, w_size))


# ------------------------------ fused Pallas kernel -------------------------- #

def _make_encoder_kernel(n, h, w, cin, cout):
    del cin  # shapes are carried by the refs
    wc = w * cout
    wp_mid = (w + 2) * cout
    inv_p = 1.0 / float(n * h * w)
    lane_steps = int(round(np.log2(w)))
    assert (1 << lane_steps) == w, "W must be a power of two"

    def lane_allreduce_per_channel(v):
        # v: (1, W*Cout). Circular shift-and-add with strides Cout*2^j leaves
        # every lane w*Cout+co holding sum_w' v[0, w'*Cout+co] (exact f32).
        for j in range(lane_steps):
            v = v + pltpu.roll(v, shift=cout << j, axis=1)
        return v

    def bn_scale_shift(c, gamma_t, beta_t):
        # one-pass sum / sum-of-squares, biased variance (train-mode BN)
        s1 = jnp.sum(c, axis=0, keepdims=True)
        s2 = jnp.sum(c * c, axis=0, keepdims=True)
        mean = lane_allreduce_per_channel(s1) * inv_p
        mean_sq = lane_allreduce_per_channel(s2) * inv_p
        var = mean_sq - mean * mean
        scale = gamma_t * lax.rsqrt(var + EPS)
        shift = beta_t - mean * scale
        return scale, shift

    def kernel(xpad_ref, xctr_ref, b1_ref, b2_ref, bsk_ref, bskt_ref,
               g1_ref, be1_ref, g2_ref, be2_ref,
               out_ref, pool_ref, c_ref, hpad_ref):
        # ---- conv1: three banded GEMMs (row shifts dh = -1, 0, +1) ----------
        for s in range(n):
            acc = jnp.zeros((h, wc), jnp.float32)
            for dh in range(3):
                acc = acc + jnp.dot(xpad_ref[s, dh:dh + h, :], b1_ref[dh],
                                    preferred_element_type=jnp.float32)
            c_ref[s * h:(s + 1) * h, :] = acc

        c1 = c_ref[...]
        sc1, sh1 = bn_scale_shift(c1, g1_ref[...], be1_ref[...])
        h1 = jnp.maximum(c1 * sc1 + sh1, 0.0)

        # ---- zero-padded h1 (VMEM scratch) as conv2 input -------------------
        hpad_ref[...] = jnp.zeros((n, h + 2, wp_mid), jnp.float32)
        for s in range(n):
            hpad_ref[s, 1:h + 1, 0:wc] = h1[s * h:(s + 1) * h, :]

        # ---- conv2 -----------------------------------------------------------
        for s in range(n):
            acc = jnp.zeros((h, wc), jnp.float32)
            for dh in range(3):
                acc = acc + jnp.dot(hpad_ref[s, dh:dh + h, :], b2_ref[dh],
                                    preferred_element_type=jnp.float32)
            c_ref[s * h:(s + 1) * h, :] = acc

        c2 = c_ref[...]
        sc2, sh2 = bn_scale_shift(c2, g2_ref[...], be2_ref[...])

        # ---- 1x1 skip conv + add + ReLU --------------------------------------
        identity = jnp.dot(xctr_ref[...], bsk_ref[...],
                           preferred_element_type=jnp.float32) + bskt_ref[...]
        out_ref[...] = jnp.maximum(c2 * sc2 + sh2 + identity, 0.0)

        # ---- fused MaxPool2d(2) ----------------------------------------------
        rows = (n * h) // 2
        o_even = out_ref[pl.ds(0, rows, stride=2), :]   # rows (sample, 2i)
        o_odd = out_ref[pl.ds(1, rows, stride=2), :]    # rows (sample, 2i+1)
        hp = jnp.maximum(o_even, o_odd)                 # (N*H/2, W*Cout)
        for j in range(w // 2):
            a = hp[:, (2 * j) * cout:(2 * j + 1) * cout]
            b = hp[:, (2 * j + 1) * cout:(2 * j + 2) * cout]
            pool_ref[:, j * cout:(j + 1) * cout] = jnp.maximum(a, b)

    return kernel


# ------------------------------ Encoder forward ------------------------------ #

def _full_spec(shape):
    nd = len(shape)
    return pl.BlockSpec(shape, lambda i, _nd=nd: (0,) * _nd)


def encoder_forward(x_nchw, params):
    n, cin, h, w = x_nchw.shape
    cout = params["w1"].shape[-1]
    assert h % 2 == 0 and w % 2 == 0 and (w & (w - 1)) == 0

    # layout glue: NCHW -> NHWC, spatial zero padding folded into the 2D slabs
    x = jnp.transpose(x_nchw, (0, 2, 3, 1))
    xpad = jnp.pad(x.reshape(n, h, w * cin),
                   ((0, 0), (1, 1), (0, 2 * cin)))       # (N, H+2, (W+2)*Cin)
    xctr = x.reshape(n * h, w * cin)                      # (N*H, W*Cin)

    # weight preprocessing (banded / block-diagonal GEMM matrices, tiled affine)
    b1 = _banded_conv_weights(params["w1"], w)            # (3, (W+2)Cin, W*Cout)
    b2 = _banded_conv_weights(params["w2"], w)            # (3, (W+2)Cout, W*Cout)
    bsk = _blockdiag_1x1_weights(params["wsk"], w)        # (W*Cin, W*Cout)
    bskt = _tile_per_channel(params["bsk"], w)
    g1t = _tile_per_channel(params["g1"], w)
    be1t = _tile_per_channel(params["be1"], w)
    g2t = _tile_per_channel(params["g2"], w)
    be2t = _tile_per_channel(params["be2"], w)

    inputs = (xpad, xctr, b1, b2, bsk, bskt, g1t, be1t, g2t, be2t)
    out_shape = (
        jax.ShapeDtypeStruct((n * h, w * cout), jnp.float32),
        jax.ShapeDtypeStruct((n * (h // 2), (w // 2) * cout), jnp.float32),
    )

    kernel = _make_encoder_kernel(n, h, w, cin, cout)
    out2d, pool2d = pl.pallas_call(
        kernel,
        out_shape=out_shape,
        grid=(1,),
        in_specs=[_full_spec(a.shape) for a in inputs],
        out_specs=(_full_spec(out_shape[0].shape),
                   _full_spec(out_shape[1].shape)),
        scratch_shapes=[
            pltpu.VMEM((n * h, w * cout), jnp.float32),            # conv acc
            pltpu.VMEM((n, h + 2, (w + 2) * cout), jnp.float32),   # padded h1
        ],
        compiler_params=pltpu.CompilerParams(
            dimension_semantics=("arbitrary",)),
    )(*inputs)

    out = out2d.reshape(n, h, w, cout)
    pooled = pool2d.reshape(n, h // 2, w // 2, cout)
    return (jnp.transpose(out, (0, 3, 1, 2)),
            jnp.transpose(pooled, (0, 3, 1, 2)))


# ----------------------- deterministic parameter init ------------------------ #

def init_params(key, cin, cout):
    ks = jax.random.split(key, 10)
    return {
        # conv weights in HWIO layout (kh, kw, ci, co)
        "w1": jax.random.normal(ks[0], (3, 3, cin, cout), jnp.float32) * 0.2,
        "b1": jax.random.normal(ks[1], (cout,), jnp.float32) * 0.1,
        "w2": jax.random.normal(ks[2], (3, 3, cout, cout), jnp.float32) * 0.2,
        "b2": jax.random.normal(ks[3], (cout,), jnp.float32) * 0.1,
        "wsk": jax.random.normal(ks[4], (cin, cout), jnp.float32) * 0.2,
        "bsk": jax.random.normal(ks[5], (cout,), jnp.float32) * 0.1,
        # non-trivial BN affine params to exercise the full normalize path
        "g1": 1.0 + 0.1 * jax.random.normal(ks[6], (cout,), jnp.float32),
        "be1": 0.1 * jax.random.normal(ks[7], (cout,), jnp.float32),
        "g2": 1.0 + 0.1 * jax.random.normal(ks[8], (cout,), jnp.float32),
        "be2": 0.1 * jax.random.normal(ks[9], (cout,), jnp.float32),
    }


# ------------------------------ pure-JAX reference --------------------------- #

def reference(x_nchw, params):
    x = jnp.transpose(x_nchw, (0, 2, 3, 1))

    def conv3x3(v, w_hwio, b):
        y = lax.conv_general_dilated(
            v, w_hwio, (1, 1), "SAME",
            dimension_numbers=("NHWC", "HWIO", "NHWC"))
        return y + b.reshape(1, 1, 1, -1)

    def bn(y, g, be):
        m = jnp.mean(y, axis=(0, 1, 2), keepdims=True)
        v = jnp.mean(jnp.square(y - m), axis=(0, 1, 2), keepdims=True)
        return ((y - m) * lax.rsqrt(v + EPS) * g.reshape(1, 1, 1, -1)
                + be.reshape(1, 1, 1, -1))

    h1 = jax.nn.relu(bn(conv3x3(x, params["w1"], params["b1"]),
                        params["g1"], params["be1"]))
    h2 = bn(conv3x3(h1, params["w2"], params["b2"]),
            params["g2"], params["be2"])
    identity = (jnp.einsum("nhwc,co->nhwo", x, params["wsk"])
                + params["bsk"].reshape(1, 1, 1, -1))
    out = jax.nn.relu(h2 + identity)
    pooled = lax.reduce_window(out, -jnp.inf, lax.max,
                               (1, 2, 2, 1), (1, 2, 2, 1), "VALID")
    return (jnp.transpose(out, (0, 3, 1, 2)),
            jnp.transpose(pooled, (0, 3, 1, 2)))


# ----------------------------------- main ------------------------------------ #

if __name__ == "__main__":
    key = jax.random.PRNGKey(0)
    kx, kp = jax.random.split(key)

    N, CIN, COUT, H, W = 2, 4, 8, 16, 16
    x = jax.random.normal(kx, (N, CIN, H, W), jnp.float32)
    params = init_params(kp, CIN, COUT)

    fwd = jax.jit(encoder_forward)
    out, pooled = fwd(x, params)
    out = jax.block_until_ready(out)
    pooled = jax.block_until_ready(pooled)

    assert out.shape == (N, COUT, H, W)
    assert pooled.shape == (N, COUT, H // 2, W // 2)

    ref_out, ref_pooled = reference(x, params)
    # Kernel matmuls use the single-pass bf16 MXU path (per the perf review),
    # so compare against the reference with a bf16-level tolerance.
    np.testing.assert_allclose(np.asarray(out), np.asarray(ref_out),
                               rtol=1e-2, atol=1e-2)
    np.testing.assert_allclose(np.asarray(pooled), np.asarray(ref_pooled),
                               rtol=1e-2, atol=1e-2)

    print("KERNEL_OK")
</pallas_src>

<mosaic_0001>
module attributes {stable_mosaic.version = 11 : i64} {
  func.func @kernel(%arg0: i32, %arg1: memref<2x18x72xf32, #tpu.memory_space<vmem>>, %arg2: memref<32x64xf32, #tpu.memory_space<vmem>>, %arg3: memref<3x72x128xf32, #tpu.memory_space<vmem>>, %arg4: memref<3x144x128xf32, #tpu.memory_space<vmem>>, %arg5: memref<64x128xf32, #tpu.memory_space<vmem>>, %arg6: memref<1x128xf32, #tpu.memory_space<vmem>>, %arg7: memref<1x128xf32, #tpu.memory_space<vmem>>, %arg8: memref<1x128xf32, #tpu.memory_space<vmem>>, %arg9: memref<1x128xf32, #tpu.memory_space<vmem>>, %arg10: memref<1x128xf32, #tpu.memory_space<vmem>>, %arg11: memref<32x128xf32, #tpu.memory_space<vmem>>, %arg12: memref<16x64xf32, #tpu.memory_space<vmem>>, %arg13: memref<32x128xf32, #tpu.memory_space<vmem>>, %arg14: memref<2x18x144xf32, #tpu.memory_space<vmem>>) attributes {dimension_semantics = [#tpu.dimension_semantics<arbitrary>], iteration_bounds = array<i64: 1>, scalar_prefetch = 0 : i64, scratch_operands = 2 : i64, tpu.core_type = #tpu.core_type<tc>, window_params = [{pipeline_mode = #tpu.pipeline_mode<synchronous>, transform_indices = @transform_0, window_bounds = array<i64: 2, 18, 72>}, {pipeline_mode = #tpu.pipeline_mode<synchronous>, transform_indices = @transform_1, window_bounds = array<i64: 32, 64>}, {pipeline_mode = #tpu.pipeline_mode<synchronous>, transform_indices = @transform_2, window_bounds = array<i64: 3, 72, 128>}, {pipeline_mode = #tpu.pipeline_mode<synchronous>, transform_indices = @transform_3, window_bounds = array<i64: 3, 144, 128>}, {pipeline_mode = #tpu.pipeline_mode<synchronous>, transform_indices = @transform_4, window_bounds = array<i64: 64, 128>}, {pipeline_mode = #tpu.pipeline_mode<synchronous>, transform_indices = @transform_5, window_bounds = array<i64: 1, 128>}, {pipeline_mode = #tpu.pipeline_mode<synchronous>, transform_indices = @transform_6, window_bounds = array<i64: 1, 128>}, {pipeline_mode = #tpu.pipeline_mode<synchronous>, transform_indices = @transform_7, window_bounds = array<i64: 1, 128>}, {pipeline_mode = #tpu.pipeline_mode<synchronous>, transform_indices = @transform_8, window_bounds = array<i64: 1, 128>}, {pipeline_mode = #tpu.pipeline_mode<synchronous>, transform_indices = @transform_9, window_bounds = array<i64: 1, 128>}, {pipeline_mode = #tpu.pipeline_mode<synchronous>, transform_indices = @transform_10, window_bounds = array<i64: 32, 128>}, {pipeline_mode = #tpu.pipeline_mode<synchronous>, transform_indices = @transform_11, window_bounds = array<i64: 16, 64>}]} {
    %cst = arith.constant 0.000000e+00 : f32
    %0 = vector.broadcast %cst : f32 to vector<16x128xf32>
    %c0 = arith.constant 0 : index
    %c0_0 = arith.constant 0 : index
    %c0_1 = arith.constant 0 : index
    %1 = vector.load %arg1[%c0, %c0_0, %c0_1] : memref<2x18x72xf32, #tpu.memory_space<vmem>>, vector<1x16x72xf32>
    %2 = vector.shape_cast %1 : vector<1x16x72xf32> to vector<16x72xf32>
    %c0_2 = arith.constant 0 : index
    %c0_3 = arith.constant 0 : index
    %c0_4 = arith.constant 0 : index
    %3 = vector.load %arg3[%c0_2, %c0_3, %c0_4] : memref<3x72x128xf32, #tpu.memory_space<vmem>>, vector<1x72x128xf32>
    %4 = vector.shape_cast %3 : vector<1x72x128xf32> to vector<72x128xf32>
    %cst_5 = arith.constant dense<0.000000e+00> : vector<16x128xf32>
    %5 = tpu.matmul %2, %4, %cst_5 {dimension_numbers = #tpu.dot_dimension_numbers<[1], [0], [0], [1], [0, 0, 1, 1], [], []>} : vector<16x72xf32>, vector<72x128xf32>, vector<16x128xf32> -> vector<16x128xf32>
    %6 = arith.addf %0, %5 : vector<16x128xf32>
    %c0_6 = arith.constant 0 : index
    %c1 = arith.constant 1 : index
    %c0_7 = arith.constant 0 : index
    %7 = vector.load %arg1[%c0_6, %c1, %c0_7] : memref<2x18x72xf32, #tpu.memory_space<vmem>>, vector<1x16x72xf32>
    %8 = vector.shape_cast %7 : vector<1x16x72xf32> to vector<16x72xf32>
    %c1_8 = arith.constant 1 : index
    %c0_9 = arith.constant 0 : index
    %c0_10 = arith.constant 0 : index
    %9 = vector.load %arg3[%c1_8, %c0_9, %c0_10] : memref<3x72x128xf32, #tpu.memory_space<vmem>>, vector<1x72x128xf32>
    %10 = vector.shape_cast %9 : vector<1x72x128xf32> to vector<72x128xf32>
    %cst_11 = arith.constant dense<0.000000e+00> : vector<16x128xf32>
    %11 = tpu.matmul %8, %10, %cst_11 {dimension_numbers = #tpu.dot_dimension_numbers<[1], [0], [0], [1], [0, 0, 1, 1], [], []>} : vector<16x72xf32>, vector<72x128xf32>, vector<16x128xf32> -> vector<16x128xf32>
    %12 = arith.addf %6, %11 : vector<16x128xf32>
    %c0_12 = arith.constant 0 : index
    %c2 = arith.constant 2 : index
    %c0_13 = arith.constant 0 : index
    %13 = vector.load %arg1[%c0_12, %c2, %c0_13] : memref<2x18x72xf32, #tpu.memory_space<vmem>>, vector<1x16x72xf32>
    %14 = vector.shape_cast %13 : vector<1x16x72xf32> to vector<16x72xf32>
    %c2_14 = arith.constant 2 : index
    %c0_15 = arith.constant 0 : index
    %c0_16 = arith.constant 0 : index
    %15 = vector.load %arg3[%c2_14, %c0_15, %c0_16] : memref<3x72x128xf32, #tpu.memory_space<vmem>>, vector<1x72x128xf32>
    %16 = vector.shape_cast %15 : vector<1x72x128xf32> to vector<72x128xf32>
    %cst_17 = arith.constant dense<0.000000e+00> : vector<16x128xf32>
    %17 = tpu.matmul %14, %16, %cst_17 {dimension_numbers = #tpu.dot_dimension_numbers<[1], [0], [0], [1], [0, 0, 1, 1], [], []>} : vector<16x72xf32>, vector<72x128xf32>, vector<16x128xf32> -> vector<16x128xf32>
    %18 = arith.addf %12, %17 : vector<16x128xf32>
    %c0_18 = arith.constant 0 : index
    %c0_19 = arith.constant 0 : index
    %19 = vector.load %arg13[%c0_18, %c0_19] : memref<32x128xf32, #tpu.memory_space<vmem>>, vector<16x128xf32>
    tpu.vector_store %arg13[%c0_18, %c0_19], %18 {strides = array<i32>} : memref<32x128xf32, #tpu.memory_space<vmem>>, vector<16x128xf32>,
    %cst_20 = arith.constant 0.000000e+00 : f32
    %20 = vector.broadcast %cst_20 : f32 to vector<16x128xf32>
    %c1_21 = arith.constant 1 : index
    %c0_22 = arith.constant 0 : index
    %c0_23 = arith.constant 0 : index
    %21 = vector.load %arg1[%c1_21, %c0_22, %c0_23] : memref<2x18x72xf32, #tpu.memory_space<vmem>>, vector<1x16x72xf32>
    %22 = vector.shape_cast %21 : vector<1x16x72xf32> to vector<16x72xf32>
    %c0_24 = arith.constant 0 : index
    %c0_25 = arith.constant 0 : index
    %c0_26 = arith.constant 0 : index
    %23 = vector.load %arg3[%c0_24, %c0_25, %c0_26] : memref<3x72x128xf32, #tpu.memory_space<vmem>>, vector<1x72x128xf32>
    %24 = vector.shape_cast %23 : vector<1x72x128xf32> to vector<72x128xf32>
    %cst_27 = arith.constant dense<0.000000e+00> : vector<16x128xf32>
    %25 = tpu.matmul %22, %24, %cst_27 {dimension_numbers = #tpu.dot_dimension_numbers<[1], [0], [0], [1], [0, 0, 1, 1], [], []>} : vector<16x72xf32>, vector<72x128xf32>, vector<16x128xf32> -> vector<16x128xf32>
    %26 = arith.addf %20, %25 : vector<16x128xf32>
    %c1_28 = arith.constant 1 : index
    %c1_29 = arith.constant 1 : index
    %c0_30 = arith.constant 0 : index
    %27 = vector.load %arg1[%c1_28, %c1_29, %c0_30] : memref<2x18x72xf32, #tpu.memory_space<vmem>>, vector<1x16x72xf32>
    %28 = vector.shape_cast %27 : vector<1x16x72xf32> to vector<16x72xf32>
    %c1_31 = arith.constant 1 : index
    %c0_32 = arith.constant 0 : index
    %c0_33 = arith.constant 0 : index
    %29 = vector.load %arg3[%c1_31, %c0_32, %c0_33] : memref<3x72x128xf32, #tpu.memory_space<vmem>>, vector<1x72x128xf32>
    %30 = vector.shape_cast %29 : vector<1x72x128xf32> to vector<72x128xf32>
    %cst_34 = arith.constant dense<0.000000e+00> : vector<16x128xf32>
    %31 = tpu.matmul %28, %30, %cst_34 {dimension_numbers = #tpu.dot_dimension_numbers<[1], [0], [0], [1], [0, 0, 1, 1], [], []>} : vector<16x72xf32>, vector<72x128xf32>, vector<16x128xf32> -> vector<16x128xf32>
    %32 = arith.addf %26, %31 : vector<16x128xf32>
    %c1_35 = arith.constant 1 : index
    %c2_36 = arith.constant 2 : index
    %c0_37 = arith.constant 0 : index
    %33 = vector.load %arg1[%c1_35, %c2_36, %c0_37] : memref<2x18x72xf32, #tpu.memory_space<vmem>>, vector<1x16x72xf32>
    %34 = vector.shape_cast %33 : vector<1x16x72xf32> to vector<16x72xf32>
    %c2_38 = arith.constant 2 : index
    %c0_39 = arith.constant 0 : index
    %c0_40 = arith.constant 0 : index
    %35 = vector.load %arg3[%c2_38, %c0_39, %c0_40] : memref<3x72x128xf32, #tpu.memory_space<vmem>>, vector<1x72x128xf32>
    %36 = vector.shape_cast %35 : vector<1x72x128xf32> to vector<72x128xf32>
    %cst_41 = arith.constant dense<0.000000e+00> : vector<16x128xf32>
    %37 = tpu.matmul %34, %36, %cst_41 {dimension_numbers = #tpu.dot_dimension_numbers<[1], [0], [0], [1], [0, 0, 1, 1], [], []>} : vector<16x72xf32>, vector<72x128xf32>, vector<16x128xf32> -> vector<16x128xf32>
    %38 = arith.addf %32, %37 : vector<16x128xf32>
    %c16 = arith.constant 16 : index
    %c0_42 = arith.constant 0 : index
    %39 = vector.load %arg13[%c16, %c0_42] : memref<32x128xf32, #tpu.memory_space<vmem>>, vector<16x128xf32>
    tpu.vector_store %arg13[%c16, %c0_42], %38 {strides = array<i32>} : memref<32x128xf32, #tpu.memory_space<vmem>>, vector<16x128xf32>,
    %c0_43 = arith.constant 0 : index
    %c0_44 = arith.constant 0 : index
    %40 = vector.load %arg13[%c0_43, %c0_44] : memref<32x128xf32, #tpu.memory_space<vmem>>, vector<32x128xf32>
    %c0_45 = arith.constant 0 : index
    %c0_46 = arith.constant 0 : index
    %41 = vector.load %arg7[%c0_45, %c0_46] : memref<1x128xf32, #tpu.memory_space<vmem>>, vector<1x128xf32>
    %c0_47 = arith.constant 0 : index
    %c0_48 = arith.constant 0 : index
    %42 = vector.load %arg8[%c0_47, %c0_48] : memref<1x128xf32, #tpu.memory_space<vmem>>, vector<1x128xf32>
    %cst_49 = arith.constant dense<0.000000e+00> : vector<128xf32>
    %43 = vector.multi_reduction <add>, %40, %cst_49 [0] : vector<32x128xf32> to vector<128xf32>
    %44 = vector.shape_cast %43 : vector<128xf32> to vector<1x128xf32>
    %45 = arith.mulf %40, %40 : vector<32x128xf32>
    %cst_50 = arith.constant dense<0.000000e+00> : vector<128xf32>
    %46 = vector.multi_reduction <add>, %45, %cst_50 [0] : vector<32x128xf32> to vector<128xf32>
    %47 = vector.shape_cast %46 : vector<128xf32> to vector<1x128xf32>
    %c8_i32 = arith.constant 8 : i32
    %48 = tpu.dynamic_rotate %44 by %c8_i32 dim 1 : vector<1x128xf32>, i32 -> vector<1x128xf32>
    %49 = arith.addf %44, %48 : vector<1x128xf32>
    %c16_i32 = arith.constant 16 : i32
    %50 = tpu.dynamic_rotate %49 by %c16_i32 dim 1 : vector<1x128xf32>, i32 -> vector<1x128xf32>
    %51 = arith.addf %49, %50 : vector<1x128xf32>
    %c32_i32 = arith.constant 32 : i32
    %52 = tpu.dynamic_rotate %51 by %c32_i32 dim 1 : vector<1x128xf32>, i32 -> vector<1x128xf32>
    %53 = arith.addf %51, %52 : vector<1x128xf32>
    %c64_i32 = arith.constant 64 : i32
    %54 = tpu.dynamic_rotate %53 by %c64_i32 dim 1 : vector<1x128xf32>, i32 -> vector<1x128xf32>
    %55 = arith.addf %53, %54 : vector<1x128xf32>
    %cst_51 = arith.constant 0.001953125 : f32
    %56 = vector.broadcast %cst_51 : f32 to vector<1x128xf32>
    %57 = arith.mulf %55, %56 : vector<1x128xf32>
    %c8_i32_52 = arith.constant 8 : i32
    %58 = tpu.dynamic_rotate %47 by %c8_i32_52 dim 1 : vector<1x128xf32>, i32 -> vector<1x128xf32>
    %59 = arith.addf %47, %58 : vector<1x128xf32>
    %c16_i32_53 = arith.constant 16 : i32
    %60 = tpu.dynamic_rotate %59 by %c16_i32_53 dim 1 : vector<1x128xf32>, i32 -> vector<1x128xf32>
    %61 = arith.addf %59, %60 : vector<1x128xf32>
    %c32_i32_54 = arith.constant 32 : i32
    %62 = tpu.dynamic_rotate %61 by %c32_i32_54 dim 1 : vector<1x128xf32>, i32 -> vector<1x128xf32>
    %63 = arith.addf %61, %62 : vector<1x128xf32>
    %c64_i32_55 = arith.constant 64 : i32
    %64 = tpu.dynamic_rotate %63 by %c64_i32_55 dim 1 : vector<1x128xf32>, i32 -> vector<1x128xf32>
    %65 = arith.addf %63, %64 : vector<1x128xf32>
    %cst_56 = arith.constant 0.001953125 : f32
    %66 = vector.broadcast %cst_56 : f32 to vector<1x128xf32>
    %67 = arith.mulf %65, %66 : vector<1x128xf32>
    %68 = arith.mulf %57, %57 : vector<1x128xf32>
    %69 = arith.subf %67, %68 : vector<1x128xf32>
    %cst_57 = arith.constant 9.99999974E-6 : f32
    %70 = vector.broadcast %cst_57 : f32 to vector<1x128xf32>
    %71 = arith.addf %69, %70 : vector<1x128xf32>
    %72 = math.rsqrt %71 : vector<1x128xf32>
    %73 = arith.mulf %41, %72 : vector<1x128xf32>
    %74 = arith.mulf %57, %73 : vector<1x128xf32>
    %75 = arith.subf %42, %74 : vector<1x128xf32>
    %76 = vector.broadcast %73 : vector<1x128xf32> to vector<32x128xf32>
    %77 = arith.mulf %40, %76 : vector<32x128xf32>
    %78 = vector.broadcast %75 : vector<1x128xf32> to vector<32x128xf32>
    %79 = arith.addf %77, %78 : vector<32x128xf32>
    %cst_58 = arith.constant 0.000000e+00 : f32
    %80 = vector.broadcast %cst_58 : f32 to vector<32x128xf32>
    %81 = arith.maximumf %79, %80 : vector<32x128xf32>
    %cst_59 = arith.constant 0.000000e+00 : f32
    %82 = vector.broadcast %cst_59 : f32 to vector<2x18x144xf32>
    %c0_60 = arith.constant 0 : index
    %c0_61 = arith.constant 0 : index
    %c0_62 = arith.constant 0 : index
    %83 = vector.load %arg14[%c0_60, %c0_61, %c0_62] : memref<2x18x144xf32, #tpu.memory_space<vmem>>, vector<2x18x144xf32>
    tpu.vector_store %arg14[%c0_60, %c0_61, %c0_62], %82 {strides = array<i32>} : memref<2x18x144xf32, #tpu.memory_space<vmem>>, vector<2x18x144xf32>,
    %84 = vector.extract_strided_slice %81 {offsets = [0, 0], sizes = [16, 128], strides = [1, 1]} : vector<32x128xf32> to vector<16x128xf32>
    %c0_63 = arith.constant 0 : index
    %c1_64 = arith.constant 1 : index
    %c0_65 = arith.constant 0 : index
    %85 = vector.load %arg14[%c0_63, %c1_64, %c0_65] : memref<2x18x144xf32, #tpu.memory_space<vmem>>, vector<1x16x128xf32>
    %86 = vector.shape_cast %85 : vector<1x16x128xf32> to vector<16x128xf32>
    %87 = vector.shape_cast %84 : vector<16x128xf32> to vector<1x16x128xf32>
    tpu.vector_store %arg14[%c0_63, %c1_64, %c0_65], %87 {strides = array<i32>} : memref<2x18x144xf32, #tpu.memory_space<vmem>>, vector<1x16x128xf32>,
    %88 = vector.extract_strided_slice %81 {offsets = [16, 0], sizes = [16, 128], strides = [1, 1]} : vector<32x128xf32> to vector<16x128xf32>
    %c1_66 = arith.constant 1 : index
    %c1_67 = arith.constant 1 : index
    %c0_68 = arith.constant 0 : index
    %89 = vector.load %arg14[%c1_66, %c1_67, %c0_68] : memref<2x18x144xf32, #tpu.memory_space<vmem>>, vector<1x16x128xf32>
    %90 = vector.shape_cast %89 : vector<1x16x128xf32> to vector<16x128xf32>
    %91 = vector.shape_cast %88 : vector<16x128xf32> to vector<1x16x128xf32>
    tpu.vector_store %arg14[%c1_66, %c1_67, %c0_68], %91 {strides = array<i32>} : memref<2x18x144xf32, #tpu.memory_space<vmem>>, vector<1x16x128xf32>,
    %cst_69 = arith.constant 0.000000e+00 : f32
    %92 = vector.broadcast %cst_69 : f32 to vector<16x128xf32>
    %c0_70 = arith.constant 0 : index
    %c0_71 = arith.constant 0 : index
    %c0_72 = arith.constant 0 : index
    %93 = vector.load %arg14[%c0_70, %c0_71, %c0_72] : memref<2x18x144xf32, #tpu.memory_space<vmem>>, vector<1x16x144xf32>
    %94 = vector.shape_cast %93 : vector<1x16x144xf32> to vector<16x144xf32>
    %c0_73 = arith.constant 0 : index
    %c0_74 = arith.constant 0 : index
    %c0_75 = arith.constant 0 : index
    %95 = vector.load %arg4[%c0_73, %c0_74, %c0_75] : memref<3x144x128xf32, #tpu.memory_space<vmem>>, vector<1x144x128xf32>
    %96 = vector.shape_cast %95 : vector<1x144x128xf32> to vector<144x128xf32>
    %cst_76 = arith.constant dense<0.000000e+00> : vector<16x128xf32>
    %97 = tpu.matmul %94, %96, %cst_76 {dimension_numbers = #tpu.dot_dimension_numbers<[1], [0], [0], [1], [0, 0, 1, 1], [], []>} : vector<16x144xf32>, vector<144x128xf32>, vector<16x128xf32> -> vector<16x128xf32>
    %98 = arith.addf %92, %97 : vector<16x128xf32>
    %c0_77 = arith.constant 0 : index
    %c1_78 = arith.constant 1 : index
    %c0_79 = arith.constant 0 : index
    %99 = vector.load %arg14[%c0_77, %c1_78, %c0_79] : memref<2x18x144xf32, #tpu.memory_space<vmem>>, vector<1x16x144xf32>
    %100 = vector.shape_cast %99 : vector<1x16x144xf32> to vector<16x144xf32>
    %c1_80 = arith.constant 1 : index
    %c0_81 = arith.constant 0 : index
    %c0_82 = arith.constant 0 : index
    %101 = vector.load %arg4[%c1_80, %c0_81, %c0_82] : memref<3x144x128xf32, #tpu.memory_space<vmem>>, vector<1x144x128xf32>
    %102 = vector.shape_cast %101 : vector<1x144x128xf32> to vector<144x128xf32>
    %cst_83 = arith.constant dense<0.000000e+00> : vector<16x128xf32>
    %103 = tpu.matmul %100, %102, %cst_83 {dimension_numbers = #tpu.dot_dimension_numbers<[1], [0], [0], [1], [0, 0, 1, 1], [], []>} : vector<16x144xf32>, vector<144x128xf32>, vector<16x128xf32> -> vector<16x128xf32>
    %104 = arith.addf %98, %103 : vector<16x128xf32>
    %c0_84 = arith.constant 0 : index
    %c2_85 = arith.constant 2 : index
    %c0_86 = arith.constant 0 : index
    %105 = vector.load %arg14[%c0_84, %c2_85, %c0_86] : memref<2x18x144xf32, #tpu.memory_space<vmem>>, vector<1x16x144xf32>
    %106 = vector.shape_cast %105 : vector<1x16x144xf32> to vector<16x144xf32>
    %c2_87 = arith.constant 2 : index
    %c0_88 = arith.constant 0 : index
    %c0_89 = arith.constant 0 : index
    %107 = vector.load %arg4[%c2_87, %c0_88, %c0_89] : memref<3x144x128xf32, #tpu.memory_space<vmem>>, vector<1x144x128xf32>
    %108 = vector.shape_cast %107 : vector<1x144x128xf32> to vector<144x128xf32>
    %cst_90 = arith.constant dense<0.000000e+00> : vector<16x128xf32>
    %109 = tpu.matmul %106, %108, %cst_90 {dimension_numbers = #tpu.dot_dimension_numbers<[1], [0], [0], [1], [0, 0, 1, 1], [], []>} : vector<16x144xf32>, vector<144x128xf32>, vector<16x128xf32> -> vector<16x128xf32>
    %110 = arith.addf %104, %109 : vector<16x128xf32>
    %c0_91 = arith.constant 0 : index
    %c0_92 = arith.constant 0 : index
    %111 = vector.load %arg13[%c0_91, %c0_92] : memref<32x128xf32, #tpu.memory_space<vmem>>, vector<16x128xf32>
    tpu.vector_store %arg13[%c0_91, %c0_92], %110 {strides = array<i32>} : memref<32x128xf32, #tpu.memory_space<vmem>>, vector<16x128xf32>,
    %cst_93 = arith.constant 0.000000e+00 : f32
    %112 = vector.broadcast %cst_93 : f32 to vector<16x128xf32>
    %c1_94 = arith.constant 1 : index
    %c0_95 = arith.constant 0 : index
    %c0_96 = arith.constant 0 : index
    %113 = vector.load %arg14[%c1_94, %c0_95, %c0_96] : memref<2x18x144xf32, #tpu.memory_space<vmem>>, vector<1x16x144xf32>
    %114 = vector.shape_cast %113 : vector<1x16x144xf32> to vector<16x144xf32>
    %c0_97 = arith.constant 0 : index
    %c0_98 = arith.constant 0 : index
    %c0_99 = arith.constant 0 : index
    %115 = vector.load %arg4[%c0_97, %c0_98, %c0_99] : memref<3x144x128xf32, #tpu.memory_space<vmem>>, vector<1x144x128xf32>
    %116 = vector.shape_cast %115 : vector<1x144x128xf32> to vector<144x128xf32>
    %cst_100 = arith.constant dense<0.000000e+00> : vector<16x128xf32>
    %117 = tpu.matmul %114, %116, %cst_100 {dimension_numbers = #tpu.dot_dimension_numbers<[1], [0], [0], [1], [0, 0, 1, 1], [], []>} : vector<16x144xf32>, vector<144x128xf32>, vector<16x128xf32> -> vector<16x128xf32>
    %118 = arith.addf %112, %117 : vector<16x128xf32>
    %c1_101 = arith.constant 1 : index
    %c1_102 = arith.constant 1 : index
    %c0_103 = arith.constant 0 : index
    %119 = vector.load %arg14[%c1_101, %c1_102, %c0_103] : memref<2x18x144xf32, #tpu.memory_space<vmem>>, vector<1x16x144xf32>
    %120 = vector.shape_cast %119 : vector<1x16x144xf32> to vector<16x144xf32>
    %c1_104 = arith.constant 1 : index
    %c0_105 = arith.constant 0 : index
    %c0_106 = arith.constant 0 : index
    %121 = vector.load %arg4[%c1_104, %c0_105, %c0_106] : memref<3x144x128xf32, #tpu.memory_space<vmem>>, vector<1x144x128xf32>
    %122 = vector.shape_cast %121 : vector<1x144x128xf32> to vector<144x128xf32>
    %cst_107 = arith.constant dense<0.000000e+00> : vector<16x128xf32>
    %123 = tpu.matmul %120, %122, %cst_107 {dimension_numbers = #tpu.dot_dimension_numbers<[1], [0], [0], [1], [0, 0, 1, 1], [], []>} : vector<16x144xf32>, vector<144x128xf32>, vector<16x128xf32> -> vector<16x128xf32>
    %124 = arith.addf %118, %123 : vector<16x128xf32>
    %c1_108 = arith.constant 1 : index
    %c2_109 = arith.constant 2 : index
    %c0_110 = arith.constant 0 : index
    %125 = vector.load %arg14[%c1_108, %c2_109, %c0_110] : memref<2x18x144xf32, #tpu.memory_space<vmem>>, vector<1x16x144xf32>
    %126 = vector.shape_cast %125 : vector<1x16x144xf32> to vector<16x144xf32>
    %c2_111 = arith.constant 2 : index
    %c0_112 = arith.constant 0 : index
    %c0_113 = arith.constant 0 : index
    %127 = vector.load %arg4[%c2_111, %c0_112, %c0_113] : memref<3x144x128xf32, #tpu.memory_space<vmem>>, vector<1x144x128xf32>
    %128 = vector.shape_cast %127 : vector<1x144x128xf32> to vector<144x128xf32>
    %cst_114 = arith.constant dense<0.000000e+00> : vector<16x128xf32>
    %129 = tpu.matmul %126, %128, %cst_114 {dimension_numbers = #tpu.dot_dimension_numbers<[1], [0], [0], [1], [0, 0, 1, 1], [], []>} : vector<16x144xf32>, vector<144x128xf32>, vector<16x128xf32> -> vector<16x128xf32>
    %130 = arith.addf %124, %129 : vector<16x128xf32>
    %c16_115 = arith.constant 16 : index
    %c0_116 = arith.constant 0 : index
    %131 = vector.load %arg13[%c16_115, %c0_116] : memref<32x128xf32, #tpu.memory_space<vmem>>, vector<16x128xf32>
    tpu.vector_store %arg13[%c16_115, %c0_116], %130 {strides = array<i32>} : memref<32x128xf32, #tpu.memory_space<vmem>>, vector<16x128xf32>,
    %c0_117 = arith.constant 0 : index
    %c0_118 = arith.constant 0 : index
    %132 = vector.load %arg13[%c0_117, %c0_118] : memref<32x128xf32, #tpu.memory_space<vmem>>, vector<32x128xf32>
    %c0_119 = arith.constant 0 : index
    %c0_120 = arith.constant 0 : index
    %133 = vector.load %arg9[%c0_119, %c0_120] : memref<1x128xf32, #tpu.memory_space<vmem>>, vector<1x128xf32>
    %c0_121 = arith.constant 0 : index
    %c0_122 = arith.constant 0 : index
    %134 = vector.load %arg10[%c0_121, %c0_122] : memref<1x128xf32, #tpu.memory_space<vmem>>, vector<1x128xf32>
    %cst_123 = arith.constant dense<0.000000e+00> : vector<128xf32>
    %135 = vector.multi_reduction <add>, %132, %cst_123 [0] : vector<32x128xf32> to vector<128xf32>
    %136 = vector.shape_cast %135 : vector<128xf32> to vector<1x128xf32>
    %137 = arith.mulf %132, %132 : vector<32x128xf32>
    %cst_124 = arith.constant dense<0.000000e+00> : vector<128xf32>
    %138 = vector.multi_reduction <add>, %137, %cst_124 [0] : vector<32x128xf32> to vector<128xf32>
    %139 = vector.shape_cast %138 : vector<128xf32> to vector<1x128xf32>
    %c8_i32_125 = arith.constant 8 : i32
    %140 = tpu.dynamic_rotate %136 by %c8_i32_125 dim 1 : vector<1x128xf32>, i32 -> vector<1x128xf32>
    %141 = arith.addf %136, %140 : vector<1x128xf32>
    %c16_i32_126 = arith.constant 16 : i32
    %142 = tpu.dynamic_rotate %141 by %c16_i32_126 dim 1 : vector<1x128xf32>, i32 -> vector<1x128xf32>
    %143 = arith.addf %141, %142 : vector<1x128xf32>
    %c32_i32_127 = arith.constant 32 : i32
    %144 = tpu.dynamic_rotate %143 by %c32_i32_127 dim 1 : vector<1x128xf32>, i32 -> vector<1x128xf32>
    %145 = arith.addf %143, %144 : vector<1x128xf32>
    %c64_i32_128 = arith.constant 64 : i32
    %146 = tpu.dynamic_rotate %145 by %c64_i32_128 dim 1 : vector<1x128xf32>, i32 -> vector<1x128xf32>
    %147 = arith.addf %145, %146 : vector<1x128xf32>
    %cst_129 = arith.constant 0.001953125 : f32
    %148 = vector.broadcast %cst_129 : f32 to vector<1x128xf32>
    %149 = arith.mulf %147, %148 : vector<1x128xf32>
    %c8_i32_130 = arith.constant 8 : i32
    %150 = tpu.dynamic_rotate %139 by %c8_i32_130 dim 1 : vector<1x128xf32>, i32 -> vector<1x128xf32>
    %151 = arith.addf %139, %150 : vector<1x128xf32>
    %c16_i32_131 = arith.constant 16 : i32
    %152 = tpu.dynamic_rotate %151 by %c16_i32_131 dim 1 : vector<1x128xf32>, i32 -> vector<1x128xf32>
    %153 = arith.addf %151, %152 : vector<1x128xf32>
    %c32_i32_132 = arith.constant 32 : i32
    %154 = tpu.dynamic_rotate %153 by %c32_i32_132 dim 1 : vector<1x128xf32>, i32 -> vector<1x128xf32>
    %155 = arith.addf %153, %154 : vector<1x128xf32>
    %c64_i32_133 = arith.constant 64 : i32
    %156 = tpu.dynamic_rotate %155 by %c64_i32_133 dim 1 : vector<1x128xf32>, i32 -> vector<1x128xf32>
    %157 = arith.addf %155, %156 : vector<1x128xf32>
    %cst_134 = arith.constant 0.001953125 : f32
    %158 = vector.broadcast %cst_134 : f32 to vector<1x128xf32>
    %159 = arith.mulf %157, %158 : vector<1x128xf32>
    %160 = arith.mulf %149, %149 : vector<1x128xf32>
    %161 = arith.subf %159, %160 : vector<1x128xf32>
    %cst_135 = arith.constant 9.99999974E-6 : f32
    %162 = vector.broadcast %cst_135 : f32 to vector<1x128xf32>
    %163 = arith.addf %161, %162 : vector<1x128xf32>
    %164 = math.rsqrt %163 : vector<1x128xf32>
    %165 = arith.mulf %133, %164 : vector<1x128xf32>
    %166 = arith.mulf %149, %165 : vector<1x128xf32>
    %167 = arith.subf %134, %166 : vector<1x128xf32>
    %c0_136 = arith.constant 0 : index
    %c0_137 = arith.constant 0 : index
    %168 = vector.load %arg2[%c0_136, %c0_137] : memref<32x64xf32, #tpu.memory_space<vmem>>, vector<32x64xf32>
    %c0_138 = arith.constant 0 : index
    %c0_139 = arith.constant 0 : index
    %169 = vector.load %arg5[%c0_138, %c0_139] : memref<64x128xf32, #tpu.memory_space<vmem>>, vector<64x128xf32>
    %cst_140 = arith.constant dense<0.000000e+00> : vector<32x128xf32>
    %170 = tpu.matmul %168, %169, %cst_140 {dimension_numbers = #tpu.dot_dimension_numbers<[1], [0], [0], [1], [0, 0, 1, 1], [], []>} : vector<32x64xf32>, vector<64x128xf32>, vector<32x128xf32> -> vector<32x128xf32>
    %c0_141 = arith.constant 0 : index
    %c0_142 = arith.constant 0 : index
    %171 = vector.load %arg6[%c0_141, %c0_142] : memref<1x128xf32, #tpu.memory_space<vmem>>, vector<1x128xf32>
    %172 = vector.broadcast %171 : vector<1x128xf32> to vector<32x128xf32>
    %173 = arith.addf %170, %172 : vector<32x128xf32>
    %174 = vector.broadcast %165 : vector<1x128xf32> to vector<32x128xf32>
    %175 = arith.mulf %132, %174 : vector<32x128xf32>
    %176 = vector.broadcast %167 : vector<1x128xf32> to vector<32x128xf32>
    %177 = arith.addf %175, %176 : vector<32x128xf32>
    %178 = arith.addf %177, %173 : vector<32x128xf32>
    %cst_143 = arith.constant 0.000000e+00 : f32
    %179 = vector.broadcast %cst_143 : f32 to vector<32x128xf32>
    %180 = arith.maximumf %178, %179 : vector<32x128xf32>
    %c0_144 = arith.constant 0 : index
    %c0_145 = arith.constant 0 : index
    %181 = vector.load %arg11[%c0_144, %c0_145] : memref<32x128xf32, #tpu.memory_space<vmem>>, vector<32x128xf32>
    tpu.vector_store %arg11[%c0_144, %c0_145], %180 {strides = array<i32>} : memref<32x128xf32, #tpu.memory_space<vmem>>, vector<32x128xf32>,
    %c0_146 = arith.constant 0 : index
    %c0_147 = arith.constant 0 : index
    %182 = tpu.strided_load %arg11[%c0_146, %c0_147] {strides = array<i32: 2, 1>} : memref<32x128xf32, #tpu.memory_space<vmem>>, vector<16x128xf32>
    %c1_148 = arith.constant 1 : index
    %c0_149 = arith.constant 0 : index
    %183 = tpu.strided_load %arg11[%c1_148, %c0_149] {strides = array<i32: 2, 1>} : memref<32x128xf32, #tpu.memory_space<vmem>>, vector<16x128xf32>
    %184 = arith.maximumf %182, %183 : vector<16x128xf32>
    %185 = vector.extract_strided_slice %184 {offsets = [0, 0], sizes = [16, 8], strides = [1, 1]} : vector<16x128xf32> to vector<16x8xf32>
    %186 = vector.extract_strided_slice %184 {offsets = [0, 8], sizes = [16, 8], strides = [1, 1]} : vector<16x128xf32> to vector<16x8xf32>
    %187 = arith.maximumf %185, %186 : vector<16x8xf32>
    %c0_150 = arith.constant 0 : index
    %c0_151 = arith.constant 0 : index
    %188 = vector.load %arg12[%c0_150, %c0_151] : memref<16x64xf32, #tpu.memory_space<vmem>>, vector<16x8xf32>
    tpu.vector_store %arg12[%c0_150, %c0_151], %187 {strides = array<i32>} : memref<16x64xf32, #tpu.memory_space<vmem>>, vector<16x8xf32>,
    %189 = vector.extract_strided_slice %184 {offsets = [0, 16], sizes = [16, 8], strides = [1, 1]} : vector<16x128xf32> to vector<16x8xf32>
    %190 = vector.extract_strided_slice %184 {offsets = [0, 24], sizes = [16, 8], strides = [1, 1]} : vector<16x128xf32> to vector<16x8xf32>
    %191 = arith.maximumf %189, %190 : vector<16x8xf32>
    %c0_152 = arith.constant 0 : index
    %c8 = arith.constant 8 : index
    %192 = vector.load %arg12[%c0_152, %c8] : memref<16x64xf32, #tpu.memory_space<vmem>>, vector<16x8xf32>
    tpu.vector_store %arg12[%c0_152, %c8], %191 {strides = array<i32>} : memref<16x64xf32, #tpu.memory_space<vmem>>, vector<16x8xf32>,
    %193 = vector.extract_strided_slice %184 {offsets = [0, 32], sizes = [16, 8], strides = [1, 1]} : vector<16x128xf32> to vector<16x8xf32>
    %194 = vector.extract_strided_slice %184 {offsets = [0, 40], sizes = [16, 8], strides = [1, 1]} : vector<16x128xf32> to vector<16x8xf32>
    %195 = arith.maximumf %193, %194 : vector<16x8xf32>
    %c0_153 = arith.constant 0 : index
    %c16_154 = arith.constant 16 : index
    %196 = vector.load %arg12[%c0_153, %c16_154] : memref<16x64xf32, #tpu.memory_space<vmem>>, vector<16x8xf32>
    tpu.vector_store %arg12[%c0_153, %c16_154], %195 {strides = array<i32>} : memref<16x64xf32, #tpu.memory_space<vmem>>, vector<16x8xf32>,
    %197 = vector.extract_strided_slice %184 {offsets = [0, 48], sizes = [16, 8], strides = [1, 1]} : vector<16x128xf32> to vector<16x8xf32>
    %198 = vector.extract_strided_slice %184 {offsets = [0, 56], sizes = [16, 8], strides = [1, 1]} : vector<16x128xf32> to vector<16x8xf32>
    %199 = arith.maximumf %197, %198 : vector<16x8xf32>
    %c0_155 = arith.constant 0 : index
    %c24 = arith.constant 24 : index
    %200 = vector.load %arg12[%c0_155, %c24] : memref<16x64xf32, #tpu.memory_space<vmem>>, vector<16x8xf32>
    tpu.vector_store %arg12[%c0_155, %c24], %199 {strides = array<i32>} : memref<16x64xf32, #tpu.memory_space<vmem>>, vector<16x8xf32>,
    %201 = vector.extract_strided_slice %184 {offsets = [0, 64], sizes = [16, 8], strides = [1, 1]} : vector<16x128xf32> to vector<16x8xf32>
    %202 = vector.extract_strided_slice %184 {offsets = [0, 72], sizes = [16, 8], strides = [1, 1]} : vector<16x128xf32> to vector<16x8xf32>
    %203 = arith.maximumf %201, %202 : vector<16x8xf32>
    %c0_156 = arith.constant 0 : index
    %c32 = arith.constant 32 : index
    %204 = vector.load %arg12[%c0_156, %c32] : memref<16x64xf32, #tpu.memory_space<vmem>>, vector<16x8xf32>
    tpu.vector_store %arg12[%c0_156, %c32], %203 {strides = array<i32>} : memref<16x64xf32, #tpu.memory_space<vmem>>, vector<16x8xf32>,
    %205 = vector.extract_strided_slice %184 {offsets = [0, 80], sizes = [16, 8], strides = [1, 1]} : vector<16x128xf32> to vector<16x8xf32>
    %206 = vector.extract_strided_slice %184 {offsets = [0, 88], sizes = [16, 8], strides = [1, 1]} : vector<16x128xf32> to vector<16x8xf32>
    %207 = arith.maximumf %205, %206 : vector<16x8xf32>
    %c0_157 = arith.constant 0 : index
    %c40 = arith.constant 40 : index
    %208 = vector.load %arg12[%c0_157, %c40] : memref<16x64xf32, #tpu.memory_space<vmem>>, vector<16x8xf32>
    tpu.vector_store %arg12[%c0_157, %c40], %207 {strides = array<i32>} : memref<16x64xf32, #tpu.memory_space<vmem>>, vector<16x8xf32>,
    %209 = vector.extract_strided_slice %184 {offsets = [0, 96], sizes = [16, 8], strides = [1, 1]} : vector<16x128xf32> to vector<16x8xf32>
    %210 = vector.extract_strided_slice %184 {offsets = [0, 104], sizes = [16, 8], strides = [1, 1]} : vector<16x128xf32> to vector<16x8xf32>
    %211 = arith.maximumf %209, %210 : vector<16x8xf32>
    %c0_158 = arith.constant 0 : index
    %c48 = arith.constant 48 : index
    %212 = vector.load %arg12[%c0_158, %c48] : memref<16x64xf32, #tpu.memory_space<vmem>>, vector<16x8xf32>
    tpu.vector_store %arg12[%c0_158, %c48], %211 {strides = array<i32>} : memref<16x64xf32, #tpu.memory_space<vmem>>, vector<16x8xf32>,
    %213 = vector.extract_strided_slice %184 {offsets = [0, 112], sizes = [16, 8], strides = [1, 1]} : vector<16x128xf32> to vector<16x8xf32>
    %214 = vector.extract_strided_slice %184 {offsets = [0, 120], sizes = [16, 8], strides = [1, 1]} : vector<16x128xf32> to vector<16x8xf32>
    %215 = arith.maximumf %213, %214 : vector<16x8xf32>
    %c0_159 = arith.constant 0 : index
    %c56 = arith.constant 56 : index
    %216 = vector.load %arg12[%c0_159, %c56] : memref<16x64xf32, #tpu.memory_space<vmem>>, vector<16x8xf32>
    tpu.vector_store %arg12[%c0_159, %c56], %215 {strides = array<i32>} : memref<16x64xf32, #tpu.memory_space<vmem>>, vector<16x8xf32>,
    return
  }
  func.func @transform_0(%arg0: i32) -> (i32, i32, i32) {
    %c0_i32 = arith.constant 0 : i32
    %c0_i32_0 = arith.constant 0 : i32
    %c0_i32_1 = arith.constant 0 : i32
    %c0_i32_2 = arith.constant 0 : i32
    return %c0_i32, %c0_i32_0, %c0_i32_1 : i32, i32, i32
  }
  func.func @transform_1(%arg0: i32) -> (i32, i32) {
    %c0_i32 = arith.constant 0 : i32
    %c0_i32_0 = arith.constant 0 : i32
    %c0_i32_1 = arith.constant 0 : i32
    return %c0_i32, %c0_i32_0 : i32, i32
  }
  func.func @transform_2(%arg0: i32) -> (i32, i32, i32) {
    %c0_i32 = arith.constant 0 : i32
    %c0_i32_0 = arith.constant 0 : i32
    %c0_i32_1 = arith.constant 0 : i32
    %c0_i32_2 = arith.constant 0 : i32
    return %c0_i32, %c0_i32_0, %c0_i32_1 : i32, i32, i32
  }
  func.func @transform_3(%arg0: i32) -> (i32, i32, i32) {
    %c0_i32 = arith.constant 0 : i32
    %c0_i32_0 = arith.constant 0 : i32
    %c0_i32_1 = arith.constant 0 : i32
    %c0_i32_2 = arith.constant 0 : i32
    return %c0_i32, %c0_i32_0, %c0_i32_1 : i32, i32, i32
  }
  func.func @transform_4(%arg0: i32) -> (i32, i32) {
    %c0_i32 = arith.constant 0 : i32
    %c0_i32_0 = arith.constant 0 : i32
    %c0_i32_1 = arith.constant 0 : i32
    return %c0_i32, %c0_i32_0 : i32, i32
  }
  func.func @transform_5(%arg0: i32) -> (i32, i32) {
    %c0_i32 = arith.constant 0 : i32
    %c0_i32_0 = arith.constant 0 : i32
    %c0_i32_1 = arith.constant 0 : i32
    return %c0_i32, %c0_i32_0 : i32, i32
  }
  func.func @transform_6(%arg0: i32) -> (i32, i32) {
    %c0_i32 = arith.constant 0 : i32
    %c0_i32_0 = arith.constant 0 : i32
    %c0_i32_1 = arith.constant 0 : i32
    return %c0_i32, %c0_i32_0 : i32, i32
  }
  func.func @transform_7(%arg0: i32) -> (i32, i32) {
    %c0_i32 = arith.constant 0 : i32
    %c0_i32_0 = arith.constant 0 : i32
    %c0_i32_1 = arith.constant 0 : i32
    return %c0_i32, %c0_i32_0 : i32, i32
  }
  func.func @transform_8(%arg0: i32) -> (i32, i32) {
    %c0_i32 = arith.constant 0 : i32
    %c0_i32_0 = arith.constant 0 : i32
    %c0_i32_1 = arith.constant 0 : i32
    return %c0_i32, %c0_i32_0 : i32, i32
  }
  func.func @transform_9(%arg0: i32) -> (i32, i32) {
    %c0_i32 = arith.constant 0 : i32
    %c0_i32_0 = arith.constant 0 : i32
    %c0_i32_1 = arith.constant 0 : i32
    return %c0_i32, %c0_i32_0 : i32, i32
  }
  func.func @transform_10(%arg0: i32) -> (i32, i32) {
    %c0_i32 = arith.constant 0 : i32
    %c0_i32_0 = arith.constant 0 : i32
    %c0_i32_1 = arith.constant 0 : i32
    return %c0_i32, %c0_i32_0 : i32, i32
  }
  func.func @transform_11(%arg0: i32) -> (i32, i32) {
    %c0_i32 = arith.constant 0 : i32
    %c0_i32_0 = arith.constant 0 : i32
    %c0_i32_1 = arith.constant 0 : i32
    return %c0_i32, %c0_i32_0 : i32, i32
  }
}

</mosaic_0001>

<llo_original>
// kernel: encoder_forward.1
$region0: #{encoder_forward.1}
  #allocation0 [shape = 'u32[]', space=smem, size = 0x4, offset = 0x4, fixed_abs, tag = 'smem constant byte address 0x4 - core index']
  #allocation1 [shape = 'u32[144,128]{1,0:T(1,128)}', space=vmem, size = 0x12000, scoped, tag = 'internal scratch']
  #allocation2 [shape = 'f32[32,128]{1,0:T(8,128)}', space=vmem, size = 0x4000, scoped, tag = 'scratch operand']
  #allocation3 [shape = 'f32[2,18,144]{2,1,0:T(8,128)}', space=vmem, size = 0xc000, scoped, tag = 'scratch operand']
  %s0 = inlined_call_operand.vmem [shape: f32[2,18,72], index: 0, kind: input, shape index: {}]
  %s1 = inlined_call_operand.vmem [shape: f32[32,64], index: 1, kind: input, shape index: {}]
  %s2 = inlined_call_operand.vmem [shape: f32[3,72,128], index: 2, kind: input, shape index: {}]
  %s3 = inlined_call_operand.vmem [shape: f32[3,144,128], index: 3, kind: input, shape index: {}]
  %s4 = inlined_call_operand.vmem [shape: f32[64,128], index: 4, kind: input, shape index: {}]
  %s5 = inlined_call_operand.vmem [shape: f32[1,128], index: 5, kind: input, shape index: {}]
  %s6 = inlined_call_operand.vmem [shape: f32[1,128], index: 6, kind: input, shape index: {}]
  %s7 = inlined_call_operand.vmem [shape: f32[1,128], index: 7, kind: input, shape index: {}]
  %s8 = inlined_call_operand.vmem [shape: f32[1,128], index: 8, kind: input, shape index: {}]
  %s9 = inlined_call_operand.vmem [shape: f32[1,128], index: 9, kind: input, shape index: {}]
  %s10 = inlined_call_operand.vmem [shape: f32[32,128], index: 10, kind: output, shape index: {0}]
  %s11 = inlined_call_operand.vmem [shape: f32[16,64], index: 11, kind: output, shape index: {1}]
  %12 = xla_tuple %s10, %s11
  %s13 = sld [smem:[#allocation0]]
  $region58: #{encoder_forward.1} parent=0
    _
  %s15 = ssub.s32 1, %s13
  %s16 = scalar_select 0, %s15, %s13
  // Predicated region
  $region2: #{encoder_forward.1} parent=0 // pred_check
    _
  $region3: #{encoder_forward.1} parent=0 // pred_check_branch
    %18 = sbr.rel (0) target = $region5
  $region4: #{encoder_forward.1} parent=0 // pred_region
    _
  $region5: #{encoder_forward.1} parent=0 // pred_fallthru
    _
  // Predicated region
  $region6: #{encoder_forward.1} parent=0 // pred_check
    _
  $region7: #{encoder_forward.1} parent=0 // pred_check_branch
    %20 = sbr.rel (0) target = $region9
  $region8: #{encoder_forward.1} parent=0 // pred_region
    _
  $region9: #{encoder_forward.1} parent=0 // pred_fallthru
    _
  // Predicated region
  $region10: #{encoder_forward.1} parent=0 // pred_check
    _
  $region11: #{encoder_forward.1} parent=0 // pred_check_branch
    %22 = sbr.rel (0) target = $region13
  $region12: #{encoder_forward.1} parent=0 // pred_region
    _
  $region13: #{encoder_forward.1} parent=0 // pred_fallthru
    _
  // Predicated region
  $region14: #{encoder_forward.1} parent=0 // pred_check
    _
  $region15: #{encoder_forward.1} parent=0 // pred_check_branch
    %24 = sbr.rel (0) target = $region17
  $region16: #{encoder_forward.1} parent=0 // pred_region
    _
  $region17: #{encoder_forward.1} parent=0 // pred_fallthru
    _
  // Predicated region
  $region18: #{encoder_forward.1} parent=0 // pred_check
    _
  $region19: #{encoder_forward.1} parent=0 // pred_check_branch
    %26 = sbr.rel (0) target = $region21
  $region20: #{encoder_forward.1} parent=0 // pred_region
    _
  $region21: #{encoder_forward.1} parent=0 // pred_fallthru
    _
  // Predicated region
  $region22: #{encoder_forward.1} parent=0 // pred_check
    _
  $region23: #{encoder_forward.1} parent=0 // pred_check_branch
    %28 = sbr.rel (0) target = $region25
  $region24: #{encoder_forward.1} parent=0 // pred_region
    _
  $region25: #{encoder_forward.1} parent=0 // pred_fallthru
    _
  // Predicated region
  $region26: #{encoder_forward.1} parent=0 // pred_check
    _
  $region27: #{encoder_forward.1} parent=0 // pred_check_branch
    %30 = sbr.rel (0) target = $region29
  $region28: #{encoder_forward.1} parent=0 // pred_region
    _
  $region29: #{encoder_forward.1} parent=0 // pred_fallthru
    _
  // Predicated region
  $region30: #{encoder_forward.1} parent=0 // pred_check
    _
  $region31: #{encoder_forward.1} parent=0 // pred_check_branch
    %32 = sbr.rel (0) target = $region33
  $region32: #{encoder_forward.1} parent=0 // pred_region
    _
  $region33: #{encoder_forward.1} parent=0 // pred_fallthru
    _
  // Predicated region
  $region34: #{encoder_forward.1} parent=0 // pred_check
    _
  $region35: #{encoder_forward.1} parent=0 // pred_check_branch
    %34 = sbr.rel (0) target = $region37
  $region36: #{encoder_forward.1} parent=0 // pred_region
    _
  $region37: #{encoder_forward.1} parent=0 // pred_fallthru
    _
  // Predicated region
  $region38: #{encoder_forward.1} parent=0 // pred_check
    _
  $region39: #{encoder_forward.1} parent=0 // pred_check_branch
    %36 = sbr.rel (0) target = $region41
  $region40: #{encoder_forward.1} parent=0 // pred_region
    _
  $region41: #{encoder_forward.1} parent=0 // pred_fallthru
    _
  %v37 = vld [vmem:[%s0] sm:$0xff]
  %v38 = vld [vmem:[%s0 + $0x8] sm:$0xff]
  %v39 = vld [vmem:[%s2] sm:$0xff]
  %v40 = vld [vmem:[%s2 + $0x8] sm:$0xff]
  %v41 = vld [vmem:[%s2 + $0x10] sm:$0xff]
  %v42 = vld [vmem:[%s2 + $0x18] sm:$0xff]
  %v43 = vld [vmem:[%s2 + $0x20] sm:$0xff]
  %v44 = vld [vmem:[%s2 + $0x28] sm:$0xff]
  %v45 = vld [vmem:[%s2 + $0x30] sm:$0xff]
  %v46 = vld [vmem:[%s2 + $0x38] sm:$0xff]
  %v47 = vld [vmem:[%s2 + $0x40] sm:$0xff]
  %v48 = vld [vmem:[%s0 + $0x1] sm:$0xff]
  %v49 = vld [vmem:[%s0 + $0x9] sm:$0xff]
  %s50 = scalar_lea.vmem %s2, 72
  %v51 = vld [vmem:[%s50] sm:$0xff]
  %v52 = vld [vmem:[%s50 + $0x8] sm:$0xff]
  %v53 = vld [vmem:[%s50 + $0x10] sm:$0xff]
  %v54 = vld [vmem:[%s50 + $0x18] sm:$0xff]
  %v55 = vld [vmem:[%s50 + $0x20] sm:$0xff]
  %v56 = vld [vmem:[%s50 + $0x28] sm:$0xff]
  %v57 = vld [vmem:[%s50 + $0x30] sm:$0xff]
  %v58 = vld [vmem:[%s50 + $0x38] sm:$0xff]
  %v59 = vld [vmem:[%s50 + $0x40] sm:$0xff]
  %vm60 = vcmask 588800
  %v62 = vsel %vm60, %v48, 0
  %v65 = vsel %vm60, %v49, 0
  %67 = vmatprep.subr.mxu0 0.0
  %68 = vmatpush1.msra.mxu0 %v51
  %69 = vmatprep.subr.mxu0 0.0
  %70 = vmatpush1.msra.mxu0 %v52
  %71 = vmatprep.subr.mxu0 0.0
  %72 = vmatpush1.msra.mxu0 %v53
  %73 = vmatprep.subr.mxu0 0.0
  %74 = vmatpush1.msra.mxu0 %v54
  %75 = vmatprep.subr.mxu0 0.0
  %76 = vmatpush1.msra.mxu0 %v55
  %77 = vmatprep.subr.mxu0 0.0
  %78 = vmatpush1.msra.mxu0 %v56
  %79 = vmatprep.subr.mxu0 0.0
  %80 = vmatpush1.msra.mxu0 %v57
  %81 = vmatprep.subr.mxu0 0.0
  %82 = vmatpush1.msra.mxu0 %v58
  %83 = vmatprep.subr.mxu0 0.0
  %84 = vmatpush1.msra.mxu0 %v59
  %85 = vmatprep.subr.mxu0 0.0
  %86 = vmatpush1.msra.mxu0 0.0
  %87 = vmatprep.subr.mxu0 0.0
  %88 = vmatpush1.msra.mxu0 0.0
  %89 = vmatprep.subr.mxu0 0.0
  %90 = vmatpush1.msra.mxu0 0.0
  %91 = vmatprep.subr.mxu0 0.0
  %92 = vmatpush1.msra.mxu0 0.0
  %93 = vmatprep.subr.mxu0 0.0
  %94 = vmatpush1.msra.mxu0 0.0
  %95 = vmatprep.subr.mxu0 0.0
  %96 = vmatpush1.msra.mxu0 0.0
  %97 = vmatprep.subr.mxu0 0.0
  %98 = vmatpush1.msra.mxu0 0.0
  %99 = vmatprep.subr.mxu0 0.0
  %100 = vmatpush1.msra.mxu0 0.0
  %101 = vmatprep.subr.mxu0 0.0
  %102 = vmatpush1.msra.mxu0 0.0
  %103 = vmatprep.subr.mxu0 0.0
  %104 = vmatpush1.msra.mxu0 0.0
  %105 = vmatprep.subr.mxu0 0.0
  %106 = vmatpush1.msra.mxu0 0.0
  %107 = vmatprep.subr.mxu0 0.0
  %108 = vmatpush1.msra.mxu0 0.0
  %109 = vmatprep.subr.mxu0 0.0
  %110 = vmatpush1.msra.mxu0 0.0
  %111 = vmatprep.subr.mxu0 0.0
  %112 = vmatpush1.msra.mxu0 0.0
  %113 = vmatprep.subr.mxu0 0.0
  %114 = vmatpush1.msra.mxu0 0.0
  %115 = vmatprep.subr.mxu0 0.0
  %116 = vmatpush1.msra.mxu0 0.0
  %117 = vmatprep.subr.mxu0 0.0
  %118 = vmatpush1.msra.mxu0 0.0
  %119 = vmatprep.subr.mxu0 0.0
  %120 = vmatpush1.msra.mxu0 0.0
  %121 = vmatprep.subr.mxu0 0.0
  %122 = vmatpush1.msra.mxu0 0.0
  %123 = vmatprep.subr.mxu0 0.0
  %124 = vmatpush1.msra.mxu0 0.0
  %125 = vmatprep.subr.mxu0 0.0
  %126 = vmatpush1.msra.mxu0 0.0
  %127 = vmatprep.subr.mxu0 0.0
  %128 = vmatpush1.msra.mxu0 0.0
  %129 = vmatprep.subr.mxu0 0.0
  %130 = vmatpush1.msra.mxu0 0.0
  %131 = vmatprep.mubr.f32.mxu0 0.0
  %132 = vmatmul.mubr.f32.gmra.mrb[0].mxu0 %v62
  %v133 = vpop.f32.mrb[0].mxu0
  %v134 = vadd.f32 0.0, %v133
  %v135 = vpop.f32.mrb[0].mxu0
  %136 = vmatprep.mubr.f32.mxu0 0.0
  %137 = vmatmul.mubr.f32.gmra.mrb[0].mxu0 %v65
  %v138 = vpop.f32.mrb[0].mxu0
  %v139 = vadd.f32 0.0, %v138
  %v140 = vpop.f32.mrb[0].mxu0
  %141 = vdwg.mxu0
  %v143 = vsel %vm60, %v37, 0
  %v146 = vsel %vm60, %v38, 0
  %148 = vmatprep.subr.mxu0 0.0
  %149 = vmatpush1.msra.mxu0 %v39
  %150 = vmatprep.subr.mxu0 0.0
  %151 = vmatpush1.msra.mxu0 %v40
  %152 = vmatprep.subr.mxu0 0.0
  %153 = vmatpush1.msra.mxu0 %v41
  %154 = vmatprep.subr.mxu0 0.0
  %155 = vmatpush1.msra.mxu0 %v42
  %156 = vmatprep.subr.mxu0 0.0
  %157 = vmatpush1.msra.mxu0 %v43
  %158 = vmatprep.subr.mxu0 0.0
  %159 = vmatpush1.msra.mxu0 %v44
  %160 = vmatprep.subr.mxu0 0.0
  %161 = vmatpush1.msra.mxu0 %v45
  %162 = vmatprep.subr.mxu0 0.0
  %163 = vmatpush1.msra.mxu0 %v46
  %164 = vmatprep.subr.mxu0 0.0
  %165 = vmatpush1.msra.mxu0 %v47
  %166 = vmatprep.subr.mxu0 0.0
  %167 = vmatpush1.msra.mxu0 0.0
  %168 = vmatprep.subr.mxu0 0.0
  %169 = vmatpush1.msra.mxu0 0.0
  %170 = vmatprep.subr.mxu0 0.0
  %171 = vmatpush1.msra.mxu0 0.0
  %172 = vmatprep.subr.mxu0 0.0
  %173 = vmatpush1.msra.mxu0 0.0
  %174 = vmatprep.subr.mxu0 0.0
  %175 = vmatpush1.msra.mxu0 0.0
  %176 = vmatprep.subr.mxu0 0.0
  %177 = vmatpush1.msra.mxu0 0.0
  %178 = vmatprep.subr.mxu0 0.0
  %179 = vmatpush1.msra.mxu0 0.0
  %180 = vmatprep.subr.mxu0 0.0
  %181 = vmatpush1.msra.mxu0 0.0
  %182 = vmatprep.subr.mxu0 0.0
  %183 = vmatpush1.msra.mxu0 0.0
  %184 = vmatprep.subr.mxu0 0.0
  %185 = vmatpush1.msra.mxu0 0.0
  %186 = vmatprep.subr.mxu0 0.0
  %187 = vmatpush1.msra.mxu0 0.0
  %188 = vmatprep.subr.mxu0 0.0
  %189 = vmatpush1.msra.mxu0 0.0
  %190 = vmatprep.subr.mxu0 0.0
  %191 = vmatpush1.msra.mxu0 0.0
  %192 = vmatprep.subr.mxu0 0.0
  %193 = vmatpush1.msra.mxu0 0.0
  %194 = vmatprep.subr.mxu0 0.0
  %195 = vmatpush1.msra.mxu0 0.0
  %196 = vmatprep.subr.mxu0 0.0
  %197 = vmatpush1.msra.mxu0 0.0
  %198 = vmatprep.subr.mxu0 0.0
  %199 = vmatpush1.msra.mxu0 0.0
  %200 = vmatprep.subr.mxu0 0.0
  %201 = vmatpush1.msra.mxu0 0.0
  %202 = vmatprep.subr.mxu0 0.0
  %203 = vmatpush1.msra.mxu0 0.0
  %204 = vmatprep.subr.mxu0 0.0
  %205 = vmatpush1.msra.mxu0 0.0
  %206 = vmatprep.subr.mxu0 0.0
  %207 = vmatpush1.msra.mxu0 0.0
  %208 = vmatprep.subr.mxu0 0.0
  %209 = vmatpush1.msra.mxu0 0.0
  %210 = vmatprep.subr.mxu0 0.0
  %211 = vmatpush1.msra.mxu0 0.0
  %212 = vmatprep.mubr.f32.mxu0 0.0
  %213 = vmatmul.mubr.f32.gmra.mrb[0].mxu0 %v143
  %v214 = vpop.f32.mrb[0].mxu0
  %v215 = vadd.f32 %v134, %v214
  %v216 = vpop.f32.mrb[0].mxu0
  %217 = vmatprep.mubr.f32.mxu0 0.0
  %218 = vmatmul.mubr.f32.gmra.mrb[0].mxu0 %v146
  %v219 = vpop.f32.mrb[0].mxu0
  %v220 = vadd.f32 %v139, %v219
  %v221 = vpop.f32.mrb[0].mxu0
  %222 = vdwg.mxu0
  %v223 = vld [vmem:[%s0 + $0x2] sm:$0xff]
  %v224 = vld [vmem:[%s0 + $0xa] sm:$0xff]
  %s225 = scalar_lea.vmem %s2, 144
  %v226 = vld [vmem:[%s225] sm:$0xff]
  %v227 = vld [vmem:[%s225 + $0x8] sm:$0xff]
  %v228 = vld [vmem:[%s225 + $0x10] sm:$0xff]
  %v229 = vld [vmem:[%s225 + $0x18] sm:$0xff]
  %v230 = vld [vmem:[%s225 + $0x20] sm:$0xff]
  %v231 = vld [vmem:[%s225 + $0x28] sm:$0xff]
  %v232 = vld [vmem:[%s225 + $0x30] sm:$0xff]
  %v233 = vld [vmem:[%s225 + $0x38] sm:$0xff]
  %v234 = vld [vmem:[%s225 + $0x40] sm:$0xff]
  %v236 = vsel %vm60, %v223, 0
  %v239 = vsel %vm60, %v224, 0
  %241 = vmatprep.subr.mxu0 0.0
  %242 = vmatpush1.msra.mxu0 %v226
  %243 = vmatprep.subr.mxu0 0.0
  %244 = vmatpush1.msra.mxu0 %v227
  %245 = vmatprep.subr.mxu0 0.0
  %246 = vmatpush1.msra.mxu0 %v228
  %247 = vmatprep.subr.mxu0 0.0
  %248 = vmatpush1.msra.mxu0 %v229
  %249 = vmatprep.subr.mxu0 0.0
  %250 = vmatpush1.msra.mxu0 %v230
  %251 = vmatprep.subr.mxu0 0.0
  %252 = vmatpush1.msra.mxu0 %v231
  %253 = vmatprep.subr.mxu0 0.0
  %254 = vmatpush1.msra.mxu0 %v232
  %255 = vmatprep.subr.mxu0 0.0
  %256 = vmatpush1.msra.mxu0 %v233
  %257 = vmatprep.subr.mxu0 0.0
  %258 = vmatpush1.msra.mxu0 %v234
  %259 = vmatprep.subr.mxu0 0.0
  %260 = vmatpush1.msra.mxu0 0.0
  %261 = vmatprep.subr.mxu0 0.0
  %262 = vmatpush1.msra.mxu0 0.0
  %263 = vmatprep.subr.mxu0 0.0
  %264 = vmatpush1.msra.mxu0 0.0
  %265 = vmatprep.subr.mxu0 0.0
  %266 = vmatpush1.msra.mxu0 0.0
  %267 = vmatprep.subr.mxu0 0.0
  %268 = vmatpush1.msra.mxu0 0.0
  %269 = vmatprep.subr.mxu0 0.0
  %270 = vmatpush1.msra.mxu0 0.0
  %271 = vmatprep.subr.mxu0 0.0
  %272 = vmatpush1.msra.mxu0 0.0
  %273 = vmatprep.subr.mxu0 0.0
  %274 = vmatpush1.msra.mxu0 0.0
  %275 = vmatprep.subr.mxu0 0.0
  %276 = vmatpush1.msra.mxu0 0.0
  %277 = vmatprep.subr.mxu0 0.0
  %278 = vmatpush1.msra.mxu0 0.0
  %279 = vmatprep.subr.mxu0 0.0
  %280 = vmatpush1.msra.mxu0 0.0
  %281 = vmatprep.subr.mxu0 0.0
  %282 = vmatpush1.msra.mxu0 0.0
  %283 = vmatprep.subr.mxu0 0.0
  %284 = vmatpush1.msra.mxu0 0.0
  %285 = vmatprep.subr.mxu0 0.0
  %286 = vmatpush1.msra.mxu0 0.0
  %287 = vmatprep.subr.mxu0 0.0
  %288 = vmatpush1.msra.mxu0 0.0
  %289 = vmatprep.subr.mxu0 0.0
  %290 = vmatpush1.msra.mxu0 0.0
  %291 = vmatprep.subr.mxu0 0.0
  %292 = vmatpush1.msra.mxu0 0.0
  %293 = vmatprep.subr.mxu0 0.0
  %294 = vmatpush1.msra.mxu0 0.0
  %295 = vmatprep.subr.mxu0 0.0
  %296 = vmatpush1.msra.mxu0 0.0
  %297 = vmatprep.subr.mxu0 0.0
  %298 = vmatpush1.msra.mxu0 0.0
  %299 = vmatprep.subr.mxu0 0.0
  %300 = vmatpush1.msra.mxu0 0.0
  %301 = vmatprep.subr.mxu0 0.0
  %302 = vmatpush1.msra.mxu0 0.0
  %303 = vmatprep.subr.mxu0 0.0
  %304 = vmatpush1.msra.mxu0 0.0
  %305 = vmatprep.mubr.f32.mxu0 0.0
  %306 = vmatmul.mubr.f32.gmra.mrb[0].mxu0 %v236
  %v307 = vpop.f32.mrb[0].mxu0
  %v308 = vadd.f32 0.0, %v307
  %v309 = vpop.f32.mrb[0].mxu0
  %310 = vmatprep.mubr.f32.mxu0 0.0
  %311 = vmatmul.mubr.f32.gmra.mrb[0].mxu0 %v239
  %v312 = vpop.f32.mrb[0].mxu0
  %v313 = vadd.f32 0.0, %v312
  %v314 = vpop.f32.mrb[0].mxu0
  %315 = vdwg.mxu0
  %v316 = vadd.f32 %v215, %v308
  %v317 = vadd.f32 %v220, %v313
  %318 = vst [vmem:[#allocation2] sm:$0xff] %v316
  %319 = vst [vmem:[#allocation2 + $0x8] sm:$0xff] %v317
  %s320 = scalar_lea.vmem %s0, 24
  %v321 = vld [vmem:[%s320] sm:$0xff]
  %v322 = vld [vmem:[%s320 + $0x8] sm:$0xff]
  %v323 = vld [vmem:[%s2] sm:$0xff]
  %v324 = vld [vmem:[%s2 + $0x8] sm:$0xff]
  %v325 = vld [vmem:[%s2 + $0x10] sm:$0xff]
  %v326 = vld [vmem:[%s2 + $0x18] sm:$0xff]
  %v327 = vld [vmem:[%s2 + $0x20] sm:$0xff]
  %v328 = vld [vmem:[%s2 + $0x28] sm:$0xff]
  %v329 = vld [vmem:[%s2 + $0x30] sm:$0xff]
  %v330 = vld [vmem:[%s2 + $0x38] sm:$0xff]
  %v331 = vld [vmem:[%s2 + $0x40] sm:$0xff]
  %v332 = vld [vmem:[%s320 + $0x1] sm:$0xff]
  %v333 = vld [vmem:[%s320 + $0x9] sm:$0xff]
  %v334 = vld [vmem:[%s50] sm:$0xff]
  %v335 = vld [vmem:[%s50 + $0x8] sm:$0xff]
  %v336 = vld [vmem:[%s50 + $0x10] sm:$0xff]
  %v337 = vld [vmem:[%s50 + $0x18] sm:$0xff]
  %v338 = vld [vmem:[%s50 + $0x20] sm:$0xff]
  %v339 = vld [vmem:[%s50 + $0x28] sm:$0xff]
  %v340 = vld [vmem:[%s50 + $0x30] sm:$0xff]
  %v341 = vld [vmem:[%s50 + $0x38] sm:$0xff]
  %v342 = vld [vmem:[%s50 + $0x40] sm:$0xff]
  %v344 = vsel %vm60, %v332, 0
  %v347 = vsel %vm60, %v333, 0
  %349 = vmatprep.subr.mxu0 0.0
  %350 = vmatpush1.msra.mxu0 %v334
  %351 = vmatprep.subr.mxu0 0.0
  %352 = vmatpush1.msra.mxu0 %v335
  %353 = vmatprep.subr.mxu0 0.0
  %354 = vmatpush1.msra.mxu0 %v336
  %355 = vmatprep.subr.mxu0 0.0
  %356 = vmatpush1.msra.mxu0 %v337
  %357 = vmatprep.subr.mxu0 0.0
  %358 = vmatpush1.msra.mxu0 %v338
  %359 = vmatprep.subr.mxu0 0.0
  %360 = vmatpush1.msra.mxu0 %v339
  %361 = vmatprep.subr.mxu0 0.0
  %362 = vmatpush1.msra.mxu0 %v340
  %363 = vmatprep.subr.mxu0 0.0
  %364 = vmatpush1.msra.mxu0 %v341
  %365 = vmatprep.subr.mxu0 0.0
  %366 = vmatpush1.msra.mxu0 %v342
  %367 = vmatprep.subr.mxu0 0.0
  %368 = vmatpush1.msra.mxu0 0.0
  %369 = vmatprep.subr.mxu0 0.0
  %370 = vmatpush1.msra.mxu0 0.0
  %371 = vmatprep.subr.mxu0 0.0
  %372 = vmatpush1.msra.mxu0 0.0
  %373 = vmatprep.subr.mxu0 0.0
  %374 = vmatpush1.msra.mxu0 0.0
  %375 = vmatprep.subr.mxu0 0.0
  %376 = vmatpush1.msra.mxu0 0.0
  %377 = vmatprep.subr.mxu0 0.0
  %378 = vmatpush1.msra.mxu0 0.0
  %379 = vmatprep.subr.mxu0 0.0
  %380 = vmatpush1.msra.mxu0 0.0
  %381 = vmatprep.subr.mxu0 0.0
  %382 = vmatpush1.msra.mxu0 0.0
  %383 = vmatprep.subr.mxu0 0.0
  %384 = vmatpush1.msra.mxu0 0.0
  %385 = vmatprep.subr.mxu0 0.0
  %386 = vmatpush1.msra.mxu0 0.0
  %387 = vmatprep.subr.mxu0 0.0
  %388 = vmatpush1.msra.mxu0 0.0
  %389 = vmatprep.subr.mxu0 0.0
  %390 = vmatpush1.msra.mxu0 0.0
  %391 = vmatprep.subr.mxu0 0.0
  %392 = vmatpush1.msra.mxu0 0.0
  %393 = vmatprep.subr.mxu0 0.0
  %394 = vmatpush1.msra.mxu0 0.0
  %395 = vmatprep.subr.mxu0 0.0
  %396 = vmatpush1.msra.mxu0 0.0
  %397 = vmatprep.subr.mxu0 0.0
  %398 = vmatpush1.msra.mxu0 0.0
  %399 = vmatprep.subr.mxu0 0.0
  %400 = vmatpush1.msra.mxu0 0.0
  %401 = vmatprep.subr.mxu0 0.0
  %402 = vmatpush1.msra.mxu0 0.0
  %403 = vmatprep.subr.mxu0 0.0
  %404 = vmatpush1.msra.mxu0 0.0
  %405 = vmatprep.subr.mxu0 0.0
  %406 = vmatpush1.msra.mxu0 0.0
  %407 = vmatprep.subr.mxu0 0.0
  %408 = vmatpush1.msra.mxu0 0.0
  %409 = vmatprep.subr.mxu0 0.0
  %410 = vmatpush1.msra.mxu0 0.0
  %411 = vmatprep.subr.mxu0 0.0
  %412 = vmatpush1.msra.mxu0 0.0
  %413 = vmatprep.mubr.f32.mxu0 0.0
  %414 = vmatmul.mubr.f32.gmra.mrb[0].mxu0 %v344
  %v415 = vpop.f32.mrb[0].mxu0
  %v416 = vadd.f32 0.0, %v415
  %v417 = vpop.f32.mrb[0].mxu0
  %418 = vmatprep.mubr.f32.mxu0 0.0
  %419 = vmatmul.mubr.f32.gmra.mrb[0].mxu0 %v347
  %v420 = vpop.f32.mrb[0].mxu0
  %v421 = vadd.f32 0.0, %v420
  %v422 = vpop.f32.mrb[0].mxu0
  %423 = vdwg.mxu0
  %v425 = vsel %vm60, %v321, 0
  %v428 = vsel %vm60, %v322, 0
  %430 = vmatprep.subr.mxu0 0.0
  %431 = vmatpush1.msra.mxu0 %v323
  %432 = vmatprep.subr.mxu0 0.0
  %433 = vmatpush1.msra.mxu0 %v324
  %434 = vmatprep.subr.mxu0 0.0
  %435 = vmatpush1.msra.mxu0 %v325
  %436 = vmatprep.subr.mxu0 0.0
  %437 = vmatpush1.msra.mxu0 %v326
  %438 = vmatprep.subr.mxu0 0.0
  %439 = vmatpush1.msra.mxu0 %v327
  %440 = vmatprep.subr.mxu0 0.0
  %441 = vmatpush1.msra.mxu0 %v328
  %442 = vmatprep.subr.mxu0 0.0
  %443 = vmatpush1.msra.mxu0 %v329
  %444 = vmatprep.subr.mxu0 0.0
  %445 = vmatpush1.msra.mxu0 %v330
  %446 = vmatprep.subr.mxu0 0.0
  %447 = vmatpush1.msra.mxu0 %v331
  %448 = vmatprep.subr.mxu0 0.0
  %449 = vmatpush1.msra.mxu0 0.0
  %450 = vmatprep.subr.mxu0 0.0
  %451 = vmatpush1.msra.mxu0 0.0
  %452 = vmatprep.subr.mxu0 0.0
  %453 = vmatpush1.msra.mxu0 0.0
  %454 = vmatprep.subr.mxu0 0.0
  %455 = vmatpush1.msra.mxu0 0.0
  %456 = vmatprep.subr.mxu0 0.0
  %457 = vmatpush1.msra.mxu0 0.0
  %458 = vmatprep.subr.mxu0 0.0
  %459 = vmatpush1.msra.mxu0 0.0
  %460 = vmatprep.subr.mxu0 0.0
  %461 = vmatpush1.msra.mxu0 0.0
  %462 = vmatprep.subr.mxu0 0.0
  %463 = vmatpush1.msra.mxu0 0.0
  %464 = vmatprep.subr.mxu0 0.0
  %465 = vmatpush1.msra.mxu0 0.0
  %466 = vmatprep.subr.mxu0 0.0
  %467 = vmatpush1.msra.mxu0 0.0
  %468 = vmatprep.subr.mxu0 0.0
  %469 = vmatpush1.msra.mxu0 0.0
  %470 = vmatprep.subr.mxu0 0.0
  %471 = vmatpush1.msra.mxu0 0.0
  %472 = vmatprep.subr.mxu0 0.0
  %473 = vmatpush1.msra.mxu0 0.0
  %474 = vmatprep.subr.mxu0 0.0
  %475 = vmatpush1.msra.mxu0 0.0
  %476 = vmatprep.subr.mxu0 0.0
  %477 = vmatpush1.msra.mxu0 0.0
  %478 = vmatprep.subr.mxu0 0.0
  %479 = vmatpush1.msra.mxu0 0.0
  %480 = vmatprep.subr.mxu0 0.0
  %481 = vmatpush1.msra.mxu0 0.0
  %482 = vmatprep.subr.mxu0 0.0
  %483 = vmatpush1.msra.mxu0 0.0
  %484 = vmatprep.subr.mxu0 0.0
  %485 = vmatpush1.msra.mxu0 0.0
  %486 = vmatprep.subr.mxu0 0.0
  %487 = vmatpush1.msra.mxu0 0.0
  %488 = vmatprep.subr.mxu0 0.0
  %489 = vmatpush1.msra.mxu0 0.0
  %490 = vmatprep.subr.mxu0 0.0
  %491 = vmatpush1.msra.mxu0 0.0
  %492 = vmatprep.subr.mxu0 0.0
  %493 = vmatpush1.msra.mxu0 0.0
  %494 = vmatprep.mubr.f32.mxu0 0.0
  %495 = vmatmul.mubr.f32.gmra.mrb[0].mxu0 %v425
  %v496 = vpop.f32.mrb[0].mxu0
  %v497 = vadd.f32 %v416, %v496
  %v498 = vpop.f32.mrb[0].mxu0
  %499 = vmatprep.mubr.f32.mxu0 0.0
  %500 = vmatmul.mubr.f32.gmra.mrb[0].mxu0 %v428
  %v501 = vpop.f32.mrb[0].mxu0
  %v502 = vadd.f32 %v421, %v501
  %v503 = vpop.f32.mrb[0].mxu0
  %504 = vdwg.mxu0
  %v505 = vld [vmem:[%s320 + $0x2] sm:$0xff]
  %v506 = vld [vmem:[%s320 + $0xa] sm:$0xff]
  %v507 = vld [vmem:[%s225] sm:$0xff]
  %v508 = vld [vmem:[%s225 + $0x8] sm:$0xff]
  %v509 = vld [vmem:[%s225 + $0x10] sm:$0xff]
  %v510 = vld [vmem:[%s225 + $0x18] sm:$0xff]
  %v511 = vld [vmem:[%s225 + $0x20] sm:$0xff]
  %v512 = vld [vmem:[%s225 + $0x28] sm:$0xff]
  %v513 = vld [vmem:[%s225 + $0x30] sm:$0xff]
  %v514 = vld [vmem:[%s225 + $0x38] sm:$0xff]
  %v515 = vld [vmem:[%s225 + $0x40] sm:$0xff]
  %v517 = vsel %vm60, %v505, 0
  %v520 = vsel %vm60, %v506, 0
  %522 = vmatprep.subr.mxu0 0.0
  %523 = vmatpush1.msra.mxu0 %v507
  %524 = vmatprep.subr.mxu0 0.0
  %525 = vmatpush1.msra.mxu0 %v508
  %526 = vmatprep.subr.mxu0 0.0
  %527 = vmatpush1.msra.mxu0 %v509
  %528 = vmatprep.subr.mxu0 0.0
  %529 = vmatpush1.msra.mxu0 %v510
  %530 = vmatprep.subr.mxu0 0.0
  %531 = vmatpush1.msra.mxu0 %v511
  %532 = vmatprep.subr.mxu0 0.0
  %533 = vmatpush1.msra.mxu0 %v512
  %534 = vmatprep.subr.mxu0 0.0
  %535 = vmatpush1.msra.mxu0 %v513
  %536 = vmatprep.subr.mxu0 0.0
  %537 = vmatpush1.msra.mxu0 %v514
  %538 = vmatprep.subr.mxu0 0.0
  %539 = vmatpush1.msra.mxu0 %v515
  %540 = vmatprep.subr.mxu0 0.0
  %541 = vmatpush1.msra.mxu0 0.0
  %542 = vmatprep.subr.mxu0 0.0
  %543 = vmatpush1.msra.mxu0 0.0
  %544 = vmatprep.subr.mxu0 0.0
  %545 = vmatpush1.msra.mxu0 0.0
  %546 = vmatprep.subr.mxu0 0.0
  %547 = vmatpush1.msra.mxu0 0.0
  %548 = vmatprep.subr.mxu0 0.0
  %549 = vmatpush1.msra.mxu0 0.0
  %550 = vmatprep.subr.mxu0 0.0
  %551 = vmatpush1.msra.mxu0 0.0
  %552 = vmatprep.subr.mxu0 0.0
  %553 = vmatpush1.msra.mxu0 0.0
  %554 = vmatprep.subr.mxu0 0.0
  %555 = vmatpush1.msra.mxu0 0.0
  %556 = vmatprep.subr.mxu0 0.0
  %557 = vmatpush1.msra.mxu0 0.0
  %558 = vmatprep.subr.mxu0 0.0
  %559 = vmatpush1.msra.mxu0 0.0
  %560 = vmatprep.subr.mxu0 0.0
  %561 = vmatpush1.msra.mxu0 0.0
  %562 = vmatprep.subr.mxu0 0.0
  %563 = vmatpush1.msra.mxu0 0.0
  %564 = vmatprep.subr.mxu0 0.0
  %565 = vmatpush1.msra.mxu0 0.0
  %566 = vmatprep.subr.mxu0 0.0
  %567 = vmatpush1.msra.mxu0 0.0
  %568 = vmatprep.subr.mxu0 0.0
  %569 = vmatpush1.msra.mxu0 0.0
  %570 = vmatprep.subr.mxu0 0.0
  %571 = vmatpush1.msra.mxu0 0.0
  %572 = vmatprep.subr.mxu0 0.0
  %573 = vmatpush1.msra.mxu0 0.0
  %574 = vmatprep.subr.mxu0 0.0
  %575 = vmatpush1.msra.mxu0 0.0
  %576 = vmatprep.subr.mxu0 0.0
  %577 = vmatpush1.msra.mxu0 0.0
  %578 = vmatprep.subr.mxu0 0.0
  %579 = vmatpush1.msra.mxu0 0.0
  %580 = vmatprep.subr.mxu0 0.0
  %581 = vmatpush1.msra.mxu0 0.0
  %582 = vmatprep.subr.mxu0 0.0
  %583 = vmatpush1.msra.mxu0 0.0
  %584 = vmatprep.subr.mxu0 0.0
  %585 = vmatpush1.msra.mxu0 0.0
  %586 = vmatprep.mubr.f32.mxu0 0.0
  %587 = vmatmul.mubr.f32.gmra.mrb[0].mxu0 %v517
  %v588 = vpop.f32.mrb[0].mxu0
  %v589 = vadd.f32 0.0, %v588
  %v590 = vpop.f32.mrb[0].mxu0
  %591 = vmatprep.mubr.f32.mxu0 0.0
  %592 = vmatmul.mubr.f32.gmra.mrb[0].mxu0 %v520
  %v593 = vpop.f32.mrb[0].mxu0
  %v594 = vadd.f32 0.0, %v593
  %v595 = vpop.f32.mrb[0].mxu0
  %596 = vdwg.mxu0
  %v597 = vadd.f32 %v497, %v589
  %v598 = vadd.f32 %v502, %v594
  %599 = vst [vmem:[#allocation2 + $0x10] sm:$0xff] %v597
  %600 = vst [vmem:[#allocation2 + $0x18] sm:$0xff] %v598
  %v601 = vld [vmem:[#allocation2] sm:$0xff]
  %v602 = vld [vmem:[#allocation2 + $0x8] sm:$0xff]
  %v603 = vld [vmem:[#allocation2 + $0x10] sm:$0xff]
  %v604 = vld [vmem:[#allocation2 + $0x18] sm:$0xff]
  %v605 = vld [vmem:[%s6] sm:$0x1]
  %v606 = vld [vmem:[%s7] sm:$0x1]
  %v607 = vadd.f32 %v601, %v602
  %v608 = vadd.f32 %v607, %v603
  %v609 = vadd.f32 %v608, %v604
  %v610 = vrot.slane %v609, 4
  %v611 = vadd.f32 %v609, %v610
  %v612 = vrot.slane %v611, 2
  %v613 = vadd.f32 %v611, %v612
  %v614 = vrot.slane %v613, 1
  %v615 = vadd.f32 %v613, %v614
  %v616 = vmul.f32 %v601, %v601
  %v617 = vmul.f32 %v602, %v602
  %v618 = vmul.f32 %v603, %v603
  %v619 = vmul.f32 %v604, %v604
  %v620 = vadd.f32 %v616, %v617
  %v621 = vadd.f32 %v620, %v618
  %v622 = vadd.f32 %v621, %v619
  %v623 = vrot.slane %v622, 4
  %v624 = vadd.f32 %v622, %v623
  %v625 = vrot.slane %v624, 2
  %v626 = vadd.f32 %v624, %v625
  %v627 = vrot.slane %v626, 1
  %v628 = vadd.f32 %v626, %v627
  %629 = vrot.lane.b32.xlu0 %v615, 8
  %v630 = vpop.permute.xlu0 %629
  %v631 = vadd.f32 %v615, %v630
  %632 = vrot.lane.b32.xlu0 %v631, 16
  %v633 = vpop.permute.xlu0 %632
  %v634 = vadd.f32 %v631, %v633
  %635 = vrot.lane.b32.xlu0 %v634, 32
  %v636 = vpop.permute.xlu0 %635
  %v637 = vadd.f32 %v634, %v636
  %638 = vrot.lane.b32.xlu0 %v637, 64
  %v639 = vpop.permute.xlu0 %638
  %v640 = vadd.f32 %v637, %v639
  %v641 = vmul.f32 %v640, 0.001953125
  %642 = vrot.lane.b32.xlu0 %v628, 8
  %v643 = vpop.permute.xlu0 %642
  %v644 = vadd.f32 %v628, %v643
  %645 = vrot.lane.b32.xlu0 %v644, 16
  %v646 = vpop.permute.xlu0 %645
  %v647 = vadd.f32 %v644, %v646
  %648 = vrot.lane.b32.xlu0 %v647, 32
  %v649 = vpop.permute.xlu0 %648
  %v650 = vadd.f32 %v647, %v649
  %651 = vrot.lane.b32.xlu0 %v650, 64
  %v652 = vpop.permute.xlu0 %651
  %v653 = vadd.f32 %v650, %v652
  %v654 = vmul.f32 %v653, 0.001953125
  %v655 = vmul.f32 %v641, %v641
  %v656 = vsub.f32 %v654, %v655
  %v657 = vadd.f32 %v656, 1e-05
  %v658 = vrsqrt.pop %v657
  %v659 = vmul.f32 %v605, %v658
  %v660 = vmul.f32 %v641, %v659
  %v661 = vsub.f32 %v606, %v660
  %v663 = vlaneseq
  %v664 = vshrl.u32 %v663, 7
  %v665 = vsub.s32 0, %v664
  %v666 = vrot.slane %v659, %v665
  %v668 = vmul.f32 %v601, %v666
  %v669 = vmul.f32 %v602, %v666
  %v670 = vmul.f32 %v603, %v666
  %v671 = vmul.f32 %v604, %v666
  %v673 = vlaneseq
  %v674 = vshrl.u32 %v673, 7
  %v675 = vsub.s32 0, %v674
  %v676 = vrot.slane %v661, %v675
  %v678 = vadd.f32 %v668, %v676
  %v679 = vadd.f32 %v669, %v676
  %v680 = vadd.f32 %v670, %v676
  %v681 = vadd.f32 %v671, %v676
  %v682 = vmax.f32 %v678, 0.0
  %v683 = vmax.f32 %v679, 0.0
  %v684 = vmax.f32 %v680, 0.0
  %v685 = vmax.f32 %v681, 0.0
  %686 = vst [vmem:[#allocation3] sm:$0xff] 0.0
  %vm687 = vcmask 130048
  %688 = vst.msk [vmem:[#allocation3 + $0x8] sm:$0xff] %vm687, 0.0
  %689 = vst [vmem:[#allocation3 + $0x10] sm:$0xff] 0.0
  %690 = vst.msk [vmem:[#allocation3 + $0x18] sm:$0xff] %vm687, 0.0
  %691 = vst [vmem:[#allocation3 + $0x20] sm:$0x3] 0.0
  %vm692 = vcmask 123904
  %693 = vst.msk [vmem:[#allocation3 + $0x28] sm:$0x3] %vm692, 0.0
  %694 = vst [vmem:[#allocation3 + $0x30] sm:$0xff] 0.0
  %695 = vst.msk [vmem:[#allocation3 + $0x38] sm:$0xff] %vm687, 0.0
  %696 = vst [vmem:[#allocation3 + $0x40] sm:$0xff] 0.0
  %697 = vst.msk [vmem:[#allocation3 + $0x48] sm:$0xff] %vm687, 0.0
  %698 = vst [vmem:[#allocation3 + $0x50] sm:$0x3] 0.0
  %699 = vst.msk [vmem:[#allocation3 + $0x58] sm:$0x3] %vm692, 0.0
  %vm702 = vcmask 1040384
  %v703 = vrot.slane %v682, 7
  %v704 = vrot.slane %v683, 7
  %v705 = vsel %vm702, %v703, %v704
  %709 = vst [vmem:[#allocation3] sm:$0xfe] %v703
  %710 = vst [vmem:[#allocation3 + $0x10] sm:$0xff] %v705
  %711 = vst [vmem:[#allocation3 + $0x20] sm:$0x1] %v704
  %v714 = vrot.slane %v684, 7
  %v715 = vrot.slane %v685, 7
  %v716 = vsel %vm702, %v714, %v715
  %s720 = scalar_lea.vmem [#allocation3], 48
  %721 = vst [vmem:[%s720] sm:$0xfe] %v714
  %722 = vst [vmem:[%s720 + $0x10] sm:$0xff] %v716
  %723 = vst [vmem:[%s720 + $0x20] sm:$0x1] %v715
  %v724 = vld [vmem:[#allocation3] sm:$0xff]
  %v725 = vld [vmem:[#allocation3 + $0x8] sm:$0xff]
  %v726 = vld [vmem:[#allocation3 + $0x10] sm:$0xff]
  %v727 = vld [vmem:[#allocation3 + $0x18] sm:$0xff]
  %v728 = vld [vmem:[%s3] sm:$0xff]
  %v729 = vld [vmem:[%s3 + $0x8] sm:$0xff]
  %v730 = vld [vmem:[%s3 + $0x10] sm:$0xff]
  %v731 = vld [vmem:[%s3 + $0x18] sm:$0xff]
  %v732 = vld [vmem:[%s3 + $0x20] sm:$0xff]
  %v733 = vld [vmem:[%s3 + $0x28] sm:$0xff]
  %v734 = vld [vmem:[%s3 + $0x30] sm:$0xff]
  %v735 = vld [vmem:[%s3 + $0x38] sm:$0xff]
  %v736 = vld [vmem:[%s3 + $0x40] sm:$0xff]
  %v737 = vld [vmem:[%s3 + $0x48] sm:$0xff]
  %v738 = vld [vmem:[%s3 + $0x50] sm:$0xff]
  %v739 = vld [vmem:[%s3 + $0x58] sm:$0xff]
  %v740 = vld [vmem:[%s3 + $0x60] sm:$0xff]
  %v741 = vld [vmem:[%s3 + $0x68] sm:$0xff]
  %v742 = vld [vmem:[%s3 + $0x70] sm:$0xff]
  %v743 = vld [vmem:[%s3 + $0x78] sm:$0xff]
  %v744 = vld [vmem:[%s3 + $0x80] sm:$0xff]
  %v745 = vld [vmem:[%s3 + $0x88] sm:$0xff]
  %v746 = vld [vmem:[#allocation3] sm:$0xfe]
  %v747 = vld [vmem:[#allocation3 + $0x8] sm:$0xfe]
  %v748 = vld [vmem:[#allocation3 + $0x20] sm:$0x1]
  %v749 = vld [vmem:[#allocation3 + $0x28] sm:$0x1]
  %s750 = scalar_lea.vmem %s3, 144
  %v751 = vld [vmem:[%s750] sm:$0xff]
  %v752 = vld [vmem:[%s750 + $0x8] sm:$0xff]
  %v753 = vld [vmem:[%s750 + $0x10] sm:$0xff]
  %v754 = vld [vmem:[%s750 + $0x18] sm:$0xff]
  %v755 = vld [vmem:[%s750 + $0x20] sm:$0xff]
  %v756 = vld [vmem:[%s750 + $0x28] sm:$0xff]
  %v757 = vld [vmem:[%s750 + $0x30] sm:$0xff]
  %v758 = vld [vmem:[%s750 + $0x38] sm:$0xff]
  %v759 = vld [vmem:[%s750 + $0x40] sm:$0xff]
  %v760 = vld [vmem:[%s750 + $0x48] sm:$0xff]
  %v761 = vld [vmem:[%s750 + $0x50] sm:$0xff]
  %v762 = vld [vmem:[%s750 + $0x58] sm:$0xff]
  %v763 = vld [vmem:[%s750 + $0x60] sm:$0xff]
  %v764 = vld [vmem:[%s750 + $0x68] sm:$0xff]
  %v765 = vld [vmem:[%s750 + $0x70] sm:$0xff]
  %v766 = vld [vmem:[%s750 + $0x78] sm:$0xff]
  %v767 = vld [vmem:[%s750 + $0x80] sm:$0xff]
  %v768 = vld [vmem:[%s750 + $0x88] sm:$0xff]
  %vm775 = vcmask 1046528
  %v776 = vrot.slane %v746, 1
  %v777 = vrot.slane %v726, 1
  %v778 = vsel %vm775, %v776, %v777
  %v779 = vrot.slane %v747, 1
  %v780 = vrot.slane %v727, 1
  %v781 = vsel %vm775, %v779, %v780
  %v782 = vrot.slane %v748, 1
  %v783 = vsel %vm775, %v777, %v782
  %v784 = vrot.slane %v749, 1
  %v785 = vsel %vm775, %v780, %v784
  %v788 = vsel %vm687, %v781, 0
  %v790 = vsel %vm687, %v785, 0
  %792 = vmatprep.subr.mxu0 0.0
  %793 = vmatpush1.msra.mxu0 %v751
  %794 = vmatprep.subr.mxu0 0.0
  %795 = vmatpush1.msra.mxu0 %v752
  %796 = vmatprep.subr.mxu0 0.0
  %797 = vmatpush1.msra.mxu0 %v753
  %798 = vmatprep.subr.mxu0 0.0
  %799 = vmatpush1.msra.mxu0 %v754
  %800 = vmatprep.subr.mxu0 0.0
  %801 = vmatpush1.msra.mxu0 %v755
  %802 = vmatprep.subr.mxu0 0.0
  %803 = vmatpush1.msra.mxu0 %v756
  %804 = vmatprep.subr.mxu0 0.0
  %805 = vmatpush1.msra.mxu0 %v757
  %806 = vmatprep.subr.mxu0 0.0
  %807 = vmatpush1.msra.mxu0 %v758
  %808 = vmatprep.subr.mxu0 0.0
  %809 = vmatpush1.msra.mxu0 %v759
  %810 = vmatprep.subr.mxu0 0.0
  %811 = vmatpush1.msra.mxu0 %v760
  %812 = vmatprep.subr.mxu0 0.0
  %813 = vmatpush1.msra.mxu0 %v761
  %814 = vmatprep.subr.mxu0 0.0
  %815 = vmatpush1.msra.mxu0 %v762
  %816 = vmatprep.subr.mxu0 0.0
  %817 = vmatpush1.msra.mxu0 %v763
  %818 = vmatprep.subr.mxu0 0.0
  %819 = vmatpush1.msra.mxu0 %v764
  %820 = vmatprep.subr.mxu0 0.0
  %821 = vmatpush1.msra.mxu0 %v765
  %822 = vmatprep.subr.mxu0 0.0
  %823 = vmatpush1.msra.mxu0 %v766
  %824 = vmatprep.subr.mxu0 0.0
  %825 = vmatpush1.msra.mxu0 %v767
  %826 = vmatprep.subr.mxu0 0.0
  %827 = vmatpush1.msra.mxu0 %v768
  %828 = vmatprep.subr.mxu0 0.0
  %829 = vmatpush1.msra.mxu0 0.0
  %830 = vmatprep.subr.mxu0 0.0
  %831 = vmatpush1.msra.mxu0 0.0
  %832 = vmatprep.subr.mxu0 0.0
  %833 = vmatpush1.msra.mxu0 0.0
  %834 = vmatprep.subr.mxu0 0.0
  %835 = vmatpush1.msra.mxu0 0.0
  %836 = vmatprep.subr.mxu0 0.0
  %837 = vmatpush1.msra.mxu0 0.0
  %838 = vmatprep.subr.mxu0 0.0
  %839 = vmatpush1.msra.mxu0 0.0
  %840 = vmatprep.subr.mxu0 0.0
  %841 = vmatpush1.msra.mxu0 0.0
  %842 = vmatprep.subr.mxu0 0.0
  %843 = vmatpush1.msra.mxu0 0.0
  %844 = vmatprep.subr.mxu0 0.0
  %845 = vmatpush1.msra.mxu0 0.0
  %846 = vmatprep.subr.mxu0 0.0
  %847 = vmatpush1.msra.mxu0 0.0
  %848 = vmatprep.subr.mxu0 0.0
  %849 = vmatpush1.msra.mxu0 0.0
  %850 = vmatprep.subr.mxu0 0.0
  %851 = vmatpush1.msra.mxu0 0.0
  %852 = vmatprep.subr.mxu0 0.0
  %853 = vmatpush1.msra.mxu0 0.0
  %854 = vmatprep.subr.mxu0 0.0
  %855 = vmatpush1.msra.mxu0 0.0
  %856 = vmatprep.mubr.f32.mxu0 %v788
  %857 = vmatmul.mubr.f32.gmra.mrb[0].mxu0 %v778
  %v858 = vpop.f32.mrb[0].mxu0
  %v859 = vadd.f32 0.0, %v858
  %v860 = vpop.f32.mrb[0].mxu0
  %861 = vmatprep.mubr.f32.mxu0 %v790
  %862 = vmatmul.mubr.f32.gmra.mrb[0].mxu0 %v783
  %v863 = vpop.f32.mrb[0].mxu0
  %v864 = vadd.f32 0.0, %v863
  %v865 = vpop.f32.mrb[0].mxu0
  %866 = vdwg.mxu0
  %v868 = vsel %vm687, %v725, 0
  %v870 = vsel %vm687, %v727, 0
  %872 = vmatprep.subr.mxu0 0.0
  %873 = vmatpush1.msra.mxu0 %v728
  %874 = vmatprep.subr.mxu0 0.0
  %875 = vmatpush1.msra.mxu0 %v729
  %876 = vmatprep.subr.mxu0 0.0
  %877 = vmatpush1.msra.mxu0 %v730
  %878 = vmatprep.subr.mxu0 0.0
  %879 = vmatpush1.msra.mxu0 %v731
  %880 = vmatprep.subr.mxu0 0.0
  %881 = vmatpush1.msra.mxu0 %v732
  %882 = vmatprep.subr.mxu0 0.0
  %883 = vmatpush1.msra.mxu0 %v733
  %884 = vmatprep.subr.mxu0 0.0
  %885 = vmatpush1.msra.mxu0 %v734
  %886 = vmatprep.subr.mxu0 0.0
  %887 = vmatpush1.msra.mxu0 %v735
  %888 = vmatprep.subr.mxu0 0.0
  %889 = vmatpush1.msra.mxu0 %v736
  %890 = vmatprep.subr.mxu0 0.0
  %891 = vmatpush1.msra.mxu0 %v737
  %892 = vmatprep.subr.mxu0 0.0
  %893 = vmatpush1.msra.mxu0 %v738
  %894 = vmatprep.subr.mxu0 0.0
  %895 = vmatpush1.msra.mxu0 %v739
  %896 = vmatprep.subr.mxu0 0.0
  %897 = vmatpush1.msra.mxu0 %v740
  %898 = vmatprep.subr.mxu0 0.0
  %899 = vmatpush1.msra.mxu0 %v741
  %900 = vmatprep.subr.mxu0 0.0
  %901 = vmatpush1.msra.mxu0 %v742
  %902 = vmatprep.subr.mxu0 0.0
  %903 = vmatpush1.msra.mxu0 %v743
  %904 = vmatprep.subr.mxu0 0.0
  %905 = vmatpush1.msra.mxu0 %v744
  %906 = vmatprep.subr.mxu0 0.0
  %907 = vmatpush1.msra.mxu0 %v745
  %908 = vmatprep.subr.mxu0 0.0
  %909 = vmatpush1.msra.mxu0 0.0
  %910 = vmatprep.subr.mxu0 0.0
  %911 = vmatpush1.msra.mxu0 0.0
  %912 = vmatprep.subr.mxu0 0.0
  %913 = vmatpush1.msra.mxu0 0.0
  %914 = vmatprep.subr.mxu0 0.0
  %915 = vmatpush1.msra.mxu0 0.0
  %916 = vmatprep.subr.mxu0 0.0
  %917 = vmatpush1.msra.mxu0 0.0
  %918 = vmatprep.subr.mxu0 0.0
  %919 = vmatpush1.msra.mxu0 0.0
  %920 = vmatprep.subr.mxu0 0.0
  %921 = vmatpush1.msra.mxu0 0.0
  %922 = vmatprep.subr.mxu0 0.0
  %923 = vmatpush1.msra.mxu0 0.0
  %924 = vmatprep.subr.mxu0 0.0
  %925 = vmatpush1.msra.mxu0 0.0
  %926 = vmatprep.subr.mxu0 0.0
  %927 = vmatpush1.msra.mxu0 0.0
  %928 = vmatprep.subr.mxu0 0.0
  %929 = vmatpush1.msra.mxu0 0.0
  %930 = vmatprep.subr.mxu0 0.0
  %931 = vmatpush1.msra.mxu0 0.0
  %932 = vmatprep.subr.mxu0 0.0
  %933 = vmatpush1.msra.mxu0 0.0
  %934 = vmatprep.subr.mxu0 0.0
  %935 = vmatpush1.msra.mxu0 0.0
  %936 = vmatprep.mubr.f32.mxu0 %v868
  %937 = vmatmul.mubr.f32.gmra.mrb[0].mxu0 %v724
  %v938 = vpop.f32.mrb[0].mxu0
  %v939 = vadd.f32 %v859, %v938
  %v940 = vpop.f32.mrb[0].mxu0
  %941 = vmatprep.mubr.f32.mxu0 %v870
  %942 = vmatmul.mubr.f32.gmra.mrb[0].mxu0 %v726
  %v943 = vpop.f32.mrb[0].mxu0
  %v944 = vadd.f32 %v864, %v943
  %v945 = vpop.f32.mrb[0].mxu0
  %946 = vdwg.mxu0
  %v947 = vld [vmem:[#allocation3] sm:$0xfc]
  %v948 = vld [vmem:[#allocation3 + $0x8] sm:$0xfc]
  %v949 = vld [vmem:[#allocation3 + $0x20] sm:$0x3]
  %v950 = vld [vmem:[#allocation3 + $0x28] sm:$0x3]
  %s951 = scalar_lea.vmem %s3, 288
  %v952 = vld [vmem:[%s951] sm:$0xff]
  %v953 = vld [vmem:[%s951 + $0x8] sm:$0xff]
  %v954 = vld [vmem:[%s951 + $0x10] sm:$0xff]
  %v955 = vld [vmem:[%s951 + $0x18] sm:$0xff]
  %v956 = vld [vmem:[%s951 + $0x20] sm:$0xff]
  %v957 = vld [vmem:[%s951 + $0x28] sm:$0xff]
  %v958 = vld [vmem:[%s951 + $0x30] sm:$0xff]
  %v959 = vld [vmem:[%s951 + $0x38] sm:$0xff]
  %v960 = vld [vmem:[%s951 + $0x40] sm:$0xff]
  %v961 = vld [vmem:[%s951 + $0x48] sm:$0xff]
  %v962 = vld [vmem:[%s951 + $0x50] sm:$0xff]
  %v963 = vld [vmem:[%s951 + $0x58] sm:$0xff]
  %v964 = vld [vmem:[%s951 + $0x60] sm:$0xff]
  %v965 = vld [vmem:[%s951 + $0x68] sm:$0xff]
  %v966 = vld [vmem:[%s951 + $0x70] sm:$0xff]
  %v967 = vld [vmem:[%s951 + $0x78] sm:$0xff]
  %v968 = vld [vmem:[%s951 + $0x80] sm:$0xff]
  %v969 = vld [vmem:[%s951 + $0x88] sm:$0xff]
  %vm974 = vcmask 1045504
  %v975 = vrot.slane %v947, 2
  %v976 = vrot.slane %v726, 2
  %v977 = vsel %vm974, %v975, %v976
  %v978 = vrot.slane %v948, 2
  %v979 = vrot.slane %v727, 2
  %v980 = vsel %vm974, %v978, %v979
  %v981 = vrot.slane %v949, 2
  %v982 = vsel %vm974, %v976, %v981
  %v983 = vrot.slane %v950, 2
  %v984 = vsel %vm974, %v979, %v983
  %v987 = vsel %vm687, %v980, 0
  %v989 = vsel %vm687, %v984, 0
  %991 = vmatprep.subr.mxu0 0.0
  %992 = vmatpush1.msra.mxu0 %v952
  %993 = vmatprep.subr.mxu0 0.0
  %994 = vmatpush1.msra.mxu0 %v953
  %995 = vmatprep.subr.mxu0 0.0
  %996 = vmatpush1.msra.mxu0 %v954
  %997 = vmatprep.subr.mxu0 0.0
  %998 = vmatpush1.msra.mxu0 %v955
  %999 = vmatprep.subr.mxu0 0.0
  %1000 = vmatpush1.msra.mxu0 %v956
  %1001 = vmatprep.subr.mxu0 0.0
  %1002 = vmatpush1.msra.mxu0 %v957
  %1003 = vmatprep.subr.mxu0 0.0
  %1004 = vmatpush1.msra.mxu0 %v958
  %1005 = vmatprep.subr.mxu0 0.0
  %1006 = vmatpush1.msra.mxu0 %v959
  %1007 = vmatprep.subr.mxu0 0.0
  %1008 = vmatpush1.msra.mxu0 %v960
  %1009 = vmatprep.subr.mxu0 0.0
  %1010 = vmatpush1.msra.mxu0 %v961
  %1011 = vmatprep.subr.mxu0 0.0
  %1012 = vmatpush1.msra.mxu0 %v962
  %1013 = vmatprep.subr.mxu0 0.0
  %1014 = vmatpush1.msra.mxu0 %v963
  %1015 = vmatprep.subr.mxu0 0.0
  %1016 = vmatpush1.msra.mxu0 %v964
  %1017 = vmatprep.subr.mxu0 0.0
  %1018 = vmatpush1.msra.mxu0 %v965
  %1019 = vmatprep.subr.mxu0 0.0
  %1020 = vmatpush1.msra.mxu0 %v966
  %1021 = vmatprep.subr.mxu0 0.0
  %1022 = vmatpush1.msra.mxu0 %v967
  %1023 = vmatprep.subr.mxu0 0.0
  %1024 = vmatpush1.msra.mxu0 %v968
  %1025 = vmatprep.subr.mxu0 0.0
  %1026 = vmatpush1.msra.mxu0 %v969
  %1027 = vmatprep.subr.mxu0 0.0
  %1028 = vmatpush1.msra.mxu0 0.0
  %1029 = vmatprep.subr.mxu0 0.0
  %1030 = vmatpush1.msra.mxu0 0.0
  %1031 = vmatprep.subr.mxu0 0.0
  %1032 = vmatpush1.msra.mxu0 0.0
  %1033 = vmatprep.subr.mxu0 0.0
  %1034 = vmatpush1.msra.mxu0 0.0
  %1035 = vmatprep.subr.mxu0 0.0
  %1036 = vmatpush1.msra.mxu0 0.0
  %1037 = vmatprep.subr.mxu0 0.0
  %1038 = vmatpush1.msra.mxu0 0.0
  %1039 = vmatprep.subr.mxu0 0.0
  %1040 = vmatpush1.msra.mxu0 0.0
  %1041 = vmatprep.subr.mxu0 0.0
  %1042 = vmatpush1.msra.mxu0 0.0
  %1043 = vmatprep.subr.mxu0 0.0
  %1044 = vmatpush1.msra.mxu0 0.0
  %1045 = vmatprep.subr.mxu0 0.0
  %1046 = vmatpush1.msra.mxu0 0.0
  %1047 = vmatprep.subr.mxu0 0.0
  %1048 = vmatpush1.msra.mxu0 0.0
  %1049 = vmatprep.subr.mxu0 0.0
  %1050 = vmatpush1.msra.mxu0 0.0
  %1051 = vmatprep.subr.mxu0 0.0
  %1052 = vmatpush1.msra.mxu0 0.0
  %1053 = vmatprep.subr.mxu0 0.0
  %1054 = vmatpush1.msra.mxu0 0.0
  %1055 = vmatprep.mubr.f32.mxu0 %v987
  %1056 = vmatmul.mubr.f32.gmra.mrb[0].mxu0 %v977
  %v1057 = vpop.f32.mrb[0].mxu0
  %v1058 = vadd.f32 0.0, %v1057
  %v1059 = vpop.f32.mrb[0].mxu0
  %1060 = vmatprep.mubr.f32.mxu0 %v989
  %1061 = vmatmul.mubr.f32.gmra.mrb[0].mxu0 %v982
  %v1062 = vpop.f32.mrb[0].mxu0
  %v1063 = vadd.f32 0.0, %v1062
  %v1064 = vpop.f32.mrb[0].mxu0
  %1065 = vdwg.mxu0
  %v1066 = vadd.f32 %v939, %v1058
  %v1067 = vadd.f32 %v944, %v1063
  %1068 = vst [vmem:[#allocation2] sm:$0xff] %v1066
  %1069 = vst [vmem:[#allocation2 + $0x8] sm:$0xff] %v1067
  %v1070 = vld [vmem:[%s720] sm:$0xff]
  %v1071 = vld [vmem:[%s720 + $0x8] sm:$0xff]
  %v1072 = vld [vmem:[%s720 + $0x10] sm:$0xff]
  %v1073 = vld [vmem:[%s720 + $0x18] sm:$0xff]
  %v1074 = vld [vmem:[%s3] sm:$0xff]
  %v1075 = vld [vmem:[%s3 + $0x8] sm:$0xff]
  %v1076 = vld [vmem:[%s3 + $0x10] sm:$0xff]
  %v1077 = vld [vmem:[%s3 + $0x18] sm:$0xff]
  %v1078 = vld [vmem:[%s3 + $0x20] sm:$0xff]
  %v1079 = vld [vmem:[%s3 + $0x28] sm:$0xff]
  %v1080 = vld [vmem:[%s3 + $0x30] sm:$0xff]
  %v1081 = vld [vmem:[%s3 + $0x38] sm:$0xff]
  %v1082 = vld [vmem:[%s3 + $0x40] sm:$0xff]
  %v1083 = vld [vmem:[%s3 + $0x48] sm:$0xff]
  %v1084 = vld [vmem:[%s3 + $0x50] sm:$0xff]
  %v1085 = vld [vmem:[%s3 + $0x58] sm:$0xff]
  %v1086 = vld [vmem:[%s3 + $0x60] sm:$0xff]
  %v1087 = vld [vmem:[%s3 + $0x68] sm:$0xff]
  %v1088 = vld [vmem:[%s3 + $0x70] sm:$0xff]
  %v1089 = vld [vmem:[%s3 + $0x78] sm:$0xff]
  %v1090 = vld [vmem:[%s3 + $0x80] sm:$0xff]
  %v1091 = vld [vmem:[%s3 + $0x88] sm:$0xff]
  %v1092 = vld [vmem:[%s720] sm:$0xfe]
  %v1093 = vld [vmem:[%s720 + $0x8] sm:$0xfe]
  %v1094 = vld [vmem:[%s720 + $0x20] sm:$0x1]
  %v1095 = vld [vmem:[%s720 + $0x28] sm:$0x1]
  %v1096 = vld [vmem:[%s750] sm:$0xff]
  %v1097 = vld [vmem:[%s750 + $0x8] sm:$0xff]
  %v1098 = vld [vmem:[%s750 + $0x10] sm:$0xff]
  %v1099 = vld [vmem:[%s750 + $0x18] sm:$0xff]
  %v1100 = vld [vmem:[%s750 + $0x20] sm:$0xff]
  %v1101 = vld [vmem:[%s750 + $0x28] sm:$0xff]
  %v1102 = vld [vmem:[%s750 + $0x30] sm:$0xff]
  %v1103 = vld [vmem:[%s750 + $0x38] sm:$0xff]
  %v1104 = vld [vmem:[%s750 + $0x40] sm:$0xff]
  %v1105 = vld [vmem:[%s750 + $0x48] sm:$0xff]
  %v1106 = vld [vmem:[%s750 + $0x50] sm:$0xff]
  %v1107 = vld [vmem:[%s750 + $0x58] sm:$0xff]
  %v1108 = vld [vmem:[%s750 + $0x60] sm:$0xff]
  %v1109 = vld [vmem:[%s750 + $0x68] sm:$0xff]
  %v1110 = vld [vmem:[%s750 + $0x70] sm:$0xff]
  %v1111 = vld [vmem:[%s750 + $0x78] sm:$0xff]
  %v1112 = vld [vmem:[%s750 + $0x80] sm:$0xff]
  %v1113 = vld [vmem:[%s750 + $0x88] sm:$0xff]
  %v1120 = vrot.slane %v1092, 1
  %v1121 = vrot.slane %v1072, 1
  %v1122 = vsel %vm775, %v1120, %v1121
  %v1123 = vrot.slane %v1093, 1
  %v1124 = vrot.slane %v1073, 1
  %v1125 = vsel %vm775, %v1123, %v1124
  %v1126 = vrot.slane %v1094, 1
  %v1127 = vsel %vm775, %v1121, %v1126
  %v1128 = vrot.slane %v1095, 1
  %v1129 = vsel %vm775, %v1124, %v1128
  %v1132 = vsel %vm687, %v1125, 0
  %v1134 = vsel %vm687, %v1129, 0
  %1136 = vmatprep.subr.mxu0 0.0
  %1137 = vmatpush1.msra.mxu0 %v1096
  %1138 = vmatprep.subr.mxu0 0.0
  %1139 = vmatpush1.msra.mxu0 %v1097
  %1140 = vmatprep.subr.mxu0 0.0
  %1141 = vmatpush1.msra.mxu0 %v1098
  %1142 = vmatprep.subr.mxu0 0.0
  %1143 = vmatpush1.msra.mxu0 %v1099
  %1144 = vmatprep.subr.mxu0 0.0
  %1145 = vmatpush1.msra.mxu0 %v1100
  %1146 = vmatprep.subr.mxu0 0.0
  %1147 = vmatpush1.msra.mxu0 %v1101
  %1148 = vmatprep.subr.mxu0 0.0
  %1149 = vmatpush1.msra.mxu0 %v1102
  %1150 = vmatprep.subr.mxu0 0.0
  %1151 = vmatpush1.msra.mxu0 %v1103
  %1152 = vmatprep.subr.mxu0 0.0
  %1153 = vmatpush1.msra.mxu0 %v1104
  %1154 = vmatprep.subr.mxu0 0.0
  %1155 = vmatpush1.msra.mxu0 %v1105
  %1156 = vmatprep.subr.mxu0 0.0
  %1157 = vmatpush1.msra.mxu0 %v1106
  %1158 = vmatprep.subr.mxu0 0.0
  %1159 = vmatpush1.msra.mxu0 %v1107
  %1160 = vmatprep.subr.mxu0 0.0
  %1161 = vmatpush1.msra.mxu0 %v1108
  %1162 = vmatprep.subr.mxu0 0.0
  %1163 = vmatpush1.msra.mxu0 %v1109
  %1164 = vmatprep.subr.mxu0 0.0
  %1165 = vmatpush1.msra.mxu0 %v1110
  %1166 = vmatprep.subr.mxu0 0.0
  %1167 = vmatpush1.msra.mxu0 %v1111
  %1168 = vmatprep.subr.mxu0 0.0
  %1169 = vmatpush1.msra.mxu0 %v1112
  %1170 = vmatprep.subr.mxu0 0.0
  %1171 = vmatpush1.msra.mxu0 %v1113
  %1172 = vmatprep.subr.mxu0 0.0
  %1173 = vmatpush1.msra.mxu0 0.0
  %1174 = vmatprep.subr.mxu0 0.0
  %1175 = vmatpush1.msra.mxu0 0.0
  %1176 = vmatprep.subr.mxu0 0.0
  %1177 = vmatpush1.msra.mxu0 0.0
  %1178 = vmatprep.subr.mxu0 0.0
  %1179 = vmatpush1.msra.mxu0 0.0
  %1180 = vmatprep.subr.mxu0 0.0
  %1181 = vmatpush1.msra.mxu0 0.0
  %1182 = vmatprep.subr.mxu0 0.0
  %1183 = vmatpush1.msra.mxu0 0.0
  %1184 = vmatprep.subr.mxu0 0.0
  %1185 = vmatpush1.msra.mxu0 0.0
  %1186 = vmatprep.subr.mxu0 0.0
  %1187 = vmatpush1.msra.mxu0 0.0
  %1188 = vmatprep.subr.mxu0 0.0
  %1189 = vmatpush1.msra.mxu0 0.0
  %1190 = vmatprep.subr.mxu0 0.0
  %1191 = vmatpush1.msra.mxu0 0.0
  %1192 = vmatprep.subr.mxu0 0.0
  %1193 = vmatpush1.msra.mxu0 0.0
  %1194 = vmatprep.subr.mxu0 0.0
  %1195 = vmatpush1.msra.mxu0 0.0
  %1196 = vmatprep.subr.mxu0 0.0
  %1197 = vmatpush1.msra.mxu0 0.0
  %1198 = vmatprep.subr.mxu0 0.0
  %1199 = vmatpush1.msra.mxu0 0.0
  %1200 = vmatprep.mubr.f32.mxu0 %v1132
  %1201 = vmatmul.mubr.f32.gmra.mrb[0].mxu0 %v1122
  %v1202 = vpop.f32.mrb[0].mxu0
  %v1203 = vadd.f32 0.0, %v1202
  %v1204 = vpop.f32.mrb[0].mxu0
  %1205 = vmatprep.mubr.f32.mxu0 %v1134
  %1206 = vmatmul.mubr.f32.gmra.mrb[0].mxu0 %v1127
  %v1207 = vpop.f32.mrb[0].mxu0
  %v1208 = vadd.f32 0.0, %v1207
  %v1209 = vpop.f32.mrb[0].mxu0
  %1210 = vdwg.mxu0
  %v1212 = vsel %vm687, %v1071, 0
  %v1214 = vsel %vm687, %v1073, 0
  %1216 = vmatprep.subr.mxu0 0.0
  %1217 = vmatpush1.msra.mxu0 %v1074
  %1218 = vmatprep.subr.mxu0 0.0
  %1219 = vmatpush1.msra.mxu0 %v1075
  %1220 = vmatprep.subr.mxu0 0.0
  %1221 = vmatpush1.msra.mxu0 %v1076
  %1222 = vmatprep.subr.mxu0 0.0
  %1223 = vmatpush1.msra.mxu0 %v1077
  %1224 = vmatprep.subr.mxu0 0.0
  %1225 = vmatpush1.msra.mxu0 %v1078
  %1226 = vmatprep.subr.mxu0 0.0
  %1227 = vmatpush1.msra.mxu0 %v1079
  %1228 = vmatprep.subr.mxu0 0.0
  %1229 = vmatpush1.msra.mxu0 %v1080
  %1230 = vmatprep.subr.mxu0 0.0
  %1231 = vmatpush1.msra.mxu0 %v1081
  %1232 = vmatprep.subr.mxu0 0.0
  %1233 = vmatpush1.msra.mxu0 %v1082
  %1234 = vmatprep.subr.mxu0 0.0
  %1235 = vmatpush1.msra.mxu0 %v1083
  %1236 = vmatprep.subr.mxu0 0.0
  %1237 = vmatpush1.msra.mxu0 %v1084
  %1238 = vmatprep.subr.mxu0 0.0
  %1239 = vmatpush1.msra.mxu0 %v1085
  %1240 = vmatprep.subr.mxu0 0.0
  %1241 = vmatpush1.msra.mxu0 %v1086
  %1242 = vmatprep.subr.mxu0 0.0
  %1243 = vmatpush1.msra.mxu0 %v1087
  %1244 = vmatprep.subr.mxu0 0.0
  %1245 = vmatpush1.msra.mxu0 %v1088
  %1246 = vmatprep.subr.mxu0 0.0
  %1247 = vmatpush1.msra.mxu0 %v1089
  %1248 = vmatprep.subr.mxu0 0.0
  %1249 = vmatpush1.msra.mxu0 %v1090
  %1250 = vmatprep.subr.mxu0 0.0
  %1251 = vmatpush1.msra.mxu0 %v1091
  %1252 = vmatprep.subr.mxu0 0.0
  %1253 = vmatpush1.msra.mxu0 0.0
  %1254 = vmatprep.subr.mxu0 0.0
  %1255 = vmatpush1.msra.mxu0 0.0
  %1256 = vmatprep.subr.mxu0 0.0
  %1257 = vmatpush1.msra.mxu0 0.0
  %1258 = vmatprep.subr.mxu0 0.0
  %1259 = vmatpush1.msra.mxu0 0.0
  %1260 = vmatprep.subr.mxu0 0.0
  %1261 = vmatpush1.msra.mxu0 0.0
  %1262 = vmatprep.subr.mxu0 0.0
  %1263 = vmatpush1.msra.mxu0 0.0
  %1264 = vmatprep.subr.mxu0 0.0
  %1265 = vmatpush1.msra.mxu0 0.0
  %1266 = vmatprep.subr.mxu0 0.0
  %1267 = vmatpush1.msra.mxu0 0.0
  %1268 = vmatprep.subr.mxu0 0.0
  %1269 = vmatpush1.msra.mxu0 0.0
  %1270 = vmatprep.subr.mxu0 0.0
  %1271 = vmatpush1.msra.mxu0 0.0
  %1272 = vmatprep.subr.mxu0 0.0
  %1273 = vmatpush1.msra.mxu0 0.0
  %1274 = vmatprep.subr.mxu0 0.0
  %1275 = vmatpush1.msra.mxu0 0.0
  %1276 = vmatprep.subr.mxu0 0.0
  %1277 = vmatpush1.msra.mxu0 0.0
  %1278 = vmatprep.subr.mxu0 0.0
  %1279 = vmatpush1.msra.mxu0 0.0
  %1280 = vmatprep.mubr.f32.mxu0 %v1212
  %1281 = vmatmul.mubr.f32.gmra.mrb[0].mxu0 %v1070
  %v1282 = vpop.f32.mrb[0].mxu0
  %v1283 = vadd.f32 %v1203, %v1282
  %v1284 = vpop.f32.mrb[0].mxu0
  %1285 = vmatprep.mubr.f32.mxu0 %v1214
  %1286 = vmatmul.mubr.f32.gmra.mrb[0].mxu0 %v1072
  %v1287 = vpop.f32.mrb[0].mxu0
  %v1288 = vadd.f32 %v1208, %v1287
  %v1289 = vpop.f32.mrb[0].mxu0
  %1290 = vdwg.mxu0
  %v1291 = vld [vmem:[%s720] sm:$0xfc]
  %v1292 = vld [vmem:[%s720 + $0x8] sm:$0xfc]
  %v1293 = vld [vmem:[%s720 + $0x20] sm:$0x3]
  %v1294 = vld [vmem:[%s720 + $0x28] sm:$0x3]
  %v1295 = vld [vmem:[%s951] sm:$0xff]
  %v1296 = vld [vmem:[%s951 + $0x8] sm:$0xff]
  %v1297 = vld [vmem:[%s951 + $0x10] sm:$0xff]
  %v1298 = vld [vmem:[%s951 + $0x18] sm:$0xff]
  %v1299 = vld [vmem:[%s951 + $0x20] sm:$0xff]
  %v1300 = vld [vmem:[%s951 + $0x28] sm:$0xff]
  %v1301 = vld [vmem:[%s951 + $0x30] sm:$0xff]
  %v1302 = vld [vmem:[%s951 + $0x38] sm:$0xff]
  %v1303 = vld [vmem:[%s951 + $0x40] sm:$0xff]
  %v1304 = vld [vmem:[%s951 + $0x48] sm:$0xff]
  %v1305 = vld [vmem:[%s951 + $0x50] sm:$0xff]
  %v1306 = vld [vmem:[%s951 + $0x58] sm:$0xff]
  %v1307 = vld [vmem:[%s951 + $0x60] sm:$0xff]
  %v1308 = vld [vmem:[%s951 + $0x68] sm:$0xff]
  %v1309 = vld [vmem:[%s951 + $0x70] sm:$0xff]
  %v1310 = vld [vmem:[%s951 + $0x78] sm:$0xff]
  %v1311 = vld [vmem:[%s951 + $0x80] sm:$0xff]
  %v1312 = vld [vmem:[%s951 + $0x88] sm:$0xff]
  %v1317 = vrot.slane %v1291, 2
  %v1318 = vrot.slane %v1072, 2
  %v1319 = vsel %vm974, %v1317, %v1318
  %v1320 = vrot.slane %v1292, 2
  %v1321 = vrot.slane %v1073, 2
  %v1322 = vsel %vm974, %v1320, %v1321
  %v1323 = vrot.slane %v1293, 2
  %v1324 = vsel %vm974, %v1318, %v1323
  %v1325 = vrot.slane %v1294, 2
  %v1326 = vsel %vm974, %v1321, %v1325
  %v1329 = vsel %vm687, %v1322, 0
  %v1331 = vsel %vm687, %v1326, 0
  %1333 = vmatprep.subr.mxu0 0.0
  %1334 = vmatpush1.msra.mxu0 %v1295
  %1335 = vmatprep.subr.mxu0 0.0
  %1336 = vmatpush1.msra.mxu0 %v1296
  %1337 = vmatprep.subr.mxu0 0.0
  %1338 = vmatpush1.msra.mxu0 %v1297
  %1339 = vmatprep.subr.mxu0 0.0
  %1340 = vmatpush1.msra.mxu0 %v1298
  %1341 = vmatprep.subr.mxu0 0.0
  %1342 = vmatpush1.msra.mxu0 %v1299
  %1343 = vmatprep.subr.mxu0 0.0
  %1344 = vmatpush1.msra.mxu0 %v1300
  %1345 = vmatprep.subr.mxu0 0.0
  %1346 = vmatpush1.msra.mxu0 %v1301
  %1347 = vmatprep.subr.mxu0 0.0
  %1348 = vmatpush1.msra.mxu0 %v1302
  %1349 = vmatprep.subr.mxu0 0.0
  %1350 = vmatpush1.msra.mxu0 %v1303
  %1351 = vmatprep.subr.mxu0 0.0
  %1352 = vmatpush1.msra.mxu0 %v1304
  %1353 = vmatprep.subr.mxu0 0.0
  %1354 = vmatpush1.msra.mxu0 %v1305
  %1355 = vmatprep.subr.mxu0 0.0
  %1356 = vmatpush1.msra.mxu0 %v1306
  %1357 = vmatprep.subr.mxu0 0.0
  %1358 = vmatpush1.msra.mxu0 %v1307
  %1359 = vmatprep.subr.mxu0 0.0
  %1360 = vmatpush1.msra.mxu0 %v1308
  %1361 = vmatprep.subr.mxu0 0.0
  %1362 = vmatpush1.msra.mxu0 %v1309
  %1363 = vmatprep.subr.mxu0 0.0
  %1364 = vmatpush1.msra.mxu0 %v1310
  %1365 = vmatprep.subr.mxu0 0.0
  %1366 = vmatpush1.msra.mxu0 %v1311
  %1367 = vmatprep.subr.mxu0 0.0
  %1368 = vmatpush1.msra.mxu0 %v1312
  %1369 = vmatprep.subr.mxu0 0.0
  %1370 = vmatpush1.msra.mxu0 0.0
  %1371 = vmatprep.subr.mxu0 0.0
  %1372 = vmatpush1.msra.mxu0 0.0
  %1373 = vmatprep.subr.mxu0 0.0
  %1374 = vmatpush1.msra.mxu0 0.0
  %1375 = vmatprep.subr.mxu0 0.0
  %1376 = vmatpush1.msra.mxu0 0.0
  %1377 = vmatprep.subr.mxu0 0.0
  %1378 = vmatpush1.msra.mxu0 0.0
  %1379 = vmatprep.subr.mxu0 0.0
  %1380 = vmatpush1.msra.mxu0 0.0
  %1381 = vmatprep.subr.mxu0 0.0
  %1382 = vmatpush1.msra.mxu0 0.0
  %1383 = vmatprep.subr.mxu0 0.0
  %1384 = vmatpush1.msra.mxu0 0.0
  %1385 = vmatprep.subr.mxu0 0.0
  %1386 = vmatpush1.msra.mxu0 0.0
  %1387 = vmatprep.subr.mxu0 0.0
  %1388 = vmatpush1.msra.mxu0 0.0
  %1389 = vmatprep.subr.mxu0 0.0
  %1390 = vmatpush1.msra.mxu0 0.0
  %1391 = vmatprep.subr.mxu0 0.0
  %1392 = vmatpush1.msra.mxu0 0.0
  %1393 = vmatprep.subr.mxu0 0.0
  %1394 = vmatpush1.msra.mxu0 0.0
  %1395 = vmatprep.subr.mxu0 0.0
  %1396 = vmatpush1.msra.mxu0 0.0
  %1397 = vmatprep.mubr.f32.mxu0 %v1329
  %1398 = vmatmul.mubr.f32.gmra.mrb[0].mxu0 %v1319
  %v1399 = vpop.f32.mrb[0].mxu0
  %v1400 = vadd.f32 0.0, %v1399
  %v1401 = vpop.f32.mrb[0].mxu0
  %1402 = vmatprep.mubr.f32.mxu0 %v1331
  %1403 = vmatmul.mubr.f32.gmra.mrb[0].mxu0 %v1324
  %v1404 = vpop.f32.mrb[0].mxu0
  %v1405 = vadd.f32 0.0, %v1404
  %v1406 = vpop.f32.mrb[0].mxu0
  %1407 = vdwg.mxu0
  %v1408 = vadd.f32 %v1283, %v1400
  %v1409 = vadd.f32 %v1288, %v1405
  %1410 = vst [vmem:[#allocation2 + $0x10] sm:$0xff] %v1408
  %1411 = vst [vmem:[#allocation2 + $0x18] sm:$0xff] %v1409
  %v1412 = vld [vmem:[#allocation2] sm:$0xff]
  %v1413 = vld [vmem:[#allocation2 + $0x8] sm:$0xff]
  %v1414 = vld [vmem:[#allocation2 + $0x10] sm:$0xff]
  %v1415 = vld [vmem:[#allocation2 + $0x18] sm:$0xff]
  %v1416 = vld [vmem:[%s8] sm:$0x1]
  %v1417 = vld [vmem:[%s9] sm:$0x1]
  %v1418 = vadd.f32 %v1412, %v1413
  %v1419 = vadd.f32 %v1418, %v1414
  %v1420 = vadd.f32 %v1419, %v1415
  %v1421 = vrot.slane %v1420, 4
  %v1422 = vadd.f32 %v1420, %v1421
  %v1423 = vrot.slane %v1422, 2
  %v1424 = vadd.f32 %v1422, %v1423
  %v1425 = vrot.slane %v1424, 1
  %v1426 = vadd.f32 %v1424, %v1425
  %v1427 = vmul.f32 %v1412, %v1412
  %v1428 = vmul.f32 %v1413, %v1413
  %v1429 = vmul.f32 %v1414, %v1414
  %v1430 = vmul.f32 %v1415, %v1415
  %v1431 = vadd.f32 %v1427, %v1428
  %v1432 = vadd.f32 %v1431, %v1429
  %v1433 = vadd.f32 %v1432, %v1430
  %v1434 = vrot.slane %v1433, 4
  %v1435 = vadd.f32 %v1433, %v1434
  %v1436 = vrot.slane %v1435, 2
  %v1437 = vadd.f32 %v1435, %v1436
  %v1438 = vrot.slane %v1437, 1
  %v1439 = vadd.f32 %v1437, %v1438
  %1440 = vrot.lane.b32.xlu0 %v1426, 8
  %v1441 = vpop.permute.xlu0 %1440
  %v1442 = vadd.f32 %v1426, %v1441
  %1443 = vrot.lane.b32.xlu0 %v1442, 16
  %v1444 = vpop.permute.xlu0 %1443
  %v1445 = vadd.f32 %v1442, %v1444
  %1446 = vrot.lane.b32.xlu0 %v1445, 32
  %v1447 = vpop.permute.xlu0 %1446
  %v1448 = vadd.f32 %v1445, %v1447
  %1449 = vrot.lane.b32.xlu0 %v1448, 64
  %v1450 = vpop.permute.xlu0 %1449
  %v1451 = vadd.f32 %v1448, %v1450
  %v1452 = vmul.f32 %v1451, 0.001953125
  %1453 = vrot.lane.b32.xlu0 %v1439, 8
  %v1454 = vpop.permute.xlu0 %1453
  %v1455 = vadd.f32 %v1439, %v1454
  %1456 = vrot.lane.b32.xlu0 %v1455, 16
  %v1457 = vpop.permute.xlu0 %1456
  %v1458 = vadd.f32 %v1455, %v1457
  %1459 = vrot.lane.b32.xlu0 %v1458, 32
  %v1460 = vpop.permute.xlu0 %1459
  %v1461 = vadd.f32 %v1458, %v1460
  %1462 = vrot.lane.b32.xlu0 %v1461, 64
  %v1463 = vpop.permute.xlu0 %1462
  %v1464 = vadd.f32 %v1461, %v1463
  %v1465 = vmul.f32 %v1464, 0.001953125
  %v1466 = vmul.f32 %v1452, %v1452
  %v1467 = vsub.f32 %v1465, %v1466
  %v1468 = vadd.f32 %v1467, 1e-05
  %v1469 = vrsqrt.pop %v1468
  %v1470 = vmul.f32 %v1416, %v1469
  %v1471 = vmul.f32 %v1452, %v1470
  %v1472 = vsub.f32 %v1417, %v1471
  %v1473 = vld [vmem:[%s1] sm:$0xff]
  %v1474 = vld [vmem:[%s1 + $0x8] sm:$0xff]
  %v1475 = vld [vmem:[%s1 + $0x10] sm:$0xff]
  %v1476 = vld [vmem:[%s1 + $0x18] sm:$0xff]
  %v1477 = vld [vmem:[%s4] sm:$0xff]
  %v1478 = vld [vmem:[%s4 + $0x8] sm:$0xff]
  %v1479 = vld [vmem:[%s4 + $0x10] sm:$0xff]
  %v1480 = vld [vmem:[%s4 + $0x18] sm:$0xff]
  %v1481 = vld [vmem:[%s4 + $0x20] sm:$0xff]
  %v1482 = vld [vmem:[%s4 + $0x28] sm:$0xff]
  %v1483 = vld [vmem:[%s4 + $0x30] sm:$0xff]
  %v1484 = vld [vmem:[%s4 + $0x38] sm:$0xff]
  %v1485 = vld [vmem:[%s5] sm:$0x1]
  %v1487 = vlaneseq
  %v1488 = vshrl.u32 %v1487, 7
  %v1489 = vsub.s32 0, %v1488
  %v1490 = vrot.slane %v1485, %v1489
  %vm1492 = vcmask 523264
  %v1494 = vsel %vm1492, %v1473, 0
  %v1497 = vsel %vm1492, %v1474, 0
  %v1500 = vsel %vm1492, %v1475, 0
  %v1503 = vsel %vm1492, %v1476, 0
  %1505 = vmatprep.subr.mxu0 0.0
  %1506 = vmatpush1.msra.mxu0 %v1477
  %1507 = vmatprep.subr.mxu0 0.0
  %1508 = vmatpush1.msra.mxu0 %v1478
  %1509 = vmatprep.subr.mxu0 0.0
  %1510 = vmatpush1.msra.mxu0 %v1479
  %1511 = vmatprep.subr.mxu0 0.0
  %1512 = vmatpush1.msra.mxu0 %v1480
  %1513 = vmatprep.subr.mxu0 0.0
  %1514 = vmatpush1.msra.mxu0 %v1481
  %1515 = vmatprep.subr.mxu0 0.0
  %1516 = vmatpush1.msra.mxu0 %v1482
  %1517 = vmatprep.subr.mxu0 0.0
  %1518 = vmatpush1.msra.mxu0 %v1483
  %1519 = vmatprep.subr.mxu0 0.0
  %1520 = vmatpush1.msra.mxu0 %v1484
  %1521 = vmatprep.subr.mxu0 0.0
  %1522 = vmatpush1.msra.mxu0 0.0
  %1523 = vmatprep.subr.mxu0 0.0
  %1524 = vmatpush1.msra.mxu0 0.0
  %1525 = vmatprep.subr.mxu0 0.0
  %1526 = vmatpush1.msra.mxu0 0.0
  %1527 = vmatprep.subr.mxu0 0.0
  %1528 = vmatpush1.msra.mxu0 0.0
  %1529 = vmatprep.subr.mxu0 0.0
  %1530 = vmatpush1.msra.mxu0 0.0
  %1531 = vmatprep.subr.mxu0 0.0
  %1532 = vmatpush1.msra.mxu0 0.0
  %1533 = vmatprep.subr.mxu0 0.0
  %1534 = vmatpush1.msra.mxu0 0.0
  %1535 = vmatprep.subr.mxu0 0.0
  %1536 = vmatpush1.msra.mxu0 0.0
  %1537 = vmatprep.subr.mxu0 0.0
  %1538 = vmatpush1.msra.mxu0 0.0
  %1539 = vmatprep.subr.mxu0 0.0
  %1540 = vmatpush1.msra.mxu0 0.0
  %1541 = vmatprep.subr.mxu0 0.0
  %1542 = vmatpush1.msra.mxu0 0.0
  %1543 = vmatprep.subr.mxu0 0.0
  %1544 = vmatpush1.msra.mxu0 0.0
  %1545 = vmatprep.subr.mxu0 0.0
  %1546 = vmatpush1.msra.mxu0 0.0
  %1547 = vmatprep.subr.mxu0 0.0
  %1548 = vmatpush1.msra.mxu0 0.0
  %1549 = vmatprep.subr.mxu0 0.0
  %1550 = vmatpush1.msra.mxu0 0.0
  %1551 = vmatprep.subr.mxu0 0.0
  %1552 = vmatpush1.msra.mxu0 0.0
  %1553 = vmatprep.subr.mxu0 0.0
  %1554 = vmatpush1.msra.mxu0 0.0
  %1555 = vmatprep.subr.mxu0 0.0
  %1556 = vmatpush1.msra.mxu0 0.0
  %1557 = vmatprep.subr.mxu0 0.0
  %1558 = vmatpush1.msra.mxu0 0.0
  %1559 = vmatprep.subr.mxu0 0.0
  %1560 = vmatpush1.msra.mxu0 0.0
  %1561 = vmatprep.subr.mxu0 0.0
  %1562 = vmatpush1.msra.mxu0 0.0
  %1563 = vmatprep.subr.mxu0 0.0
  %1564 = vmatpush1.msra.mxu0 0.0
  %1565 = vmatprep.subr.mxu0 0.0
  %1566 = vmatpush1.msra.mxu0 0.0
  %1567 = vmatprep.subr.mxu0 0.0
  %1568 = vmatpush1.msra.mxu0 0.0
  %1569 = vmatprep.mubr.f32.mxu0 0.0
  %1570 = vmatmul.mubr.f32.gmra.mrb[0].mxu0 %v1494
  %v1571 = vpop.f32.mrb[0].mxu0
  %v1572 = vadd.f32 %v1490, %v1571
  %v1573 = vpop.f32.mrb[0].mxu0
  %1574 = vmatprep.mubr.f32.mxu0 0.0
  %1575 = vmatmul.mubr.f32.gmra.mrb[0].mxu0 %v1497
  %v1576 = vpop.f32.mrb[0].mxu0
  %v1577 = vadd.f32 %v1490, %v1576
  %v1578 = vpop.f32.mrb[0].mxu0
  %1579 = vmatprep.mubr.f32.mxu0 0.0
  %1580 = vmatmul.mubr.f32.gmra.mrb[0].mxu0 %v1500
  %v1581 = vpop.f32.mrb[0].mxu0
  %v1582 = vadd.f32 %v1490, %v1581
  %v1583 = vpop.f32.mrb[0].mxu0
  %1584 = vmatprep.mubr.f32.mxu0 0.0
  %1585 = vmatmul.mubr.f32.gmra.mrb[0].mxu0 %v1503
  %v1586 = vpop.f32.mrb[0].mxu0
  %v1587 = vadd.f32 %v1490, %v1586
  %v1588 = vpop.f32.mrb[0].mxu0
  %1589 = vdwg.mxu0
  %v1591 = vlaneseq
  %v1592 = vshrl.u32 %v1591, 7
  %v1593 = vsub.s32 0, %v1592
  %v1594 = vrot.slane %v1470, %v1593
  %v1596 = vmul.f32 %v1412, %v1594
  %v1597 = vmul.f32 %v1413, %v1594
  %v1598 = vmul.f32 %v1414, %v1594
  %v1599 = vmul.f32 %v1415, %v1594
  %v1601 = vlaneseq
  %v1602 = vshrl.u32 %v1601, 7
  %v1603 = vsub.s32 0, %v1602
  %v1604 = vrot.slane %v1472, %v1603
  %v1606 = vadd.f32 %v1596, %v1604
  %v1607 = vadd.f32 %v1597, %v1604
  %v1608 = vadd.f32 %v1598, %v1604
  %v1609 = vadd.f32 %v1599, %v1604
  %v1610 = vadd.f32 %v1606, %v1572
  %v1611 = vadd.f32 %v1607, %v1577
  %v1612 = vadd.f32 %v1608, %v1582
  %v1613 = vadd.f32 %v1609, %v1587
  %v1614 = vmax.f32 %v1610, 0.0
  %v1615 = vmax.f32 %v1611, 0.0
  %v1616 = vmax.f32 %v1612, 0.0
  %v1617 = vmax.f32 %v1613, 0.0
  %1618 = vst [vmem:[%s10] sm:$0xff] %v1614
  %1619 = vst [vmem:[%s10 + $0x8] sm:$0xff] %v1615
  %1620 = vst [vmem:[%s10 + $0x10] sm:$0xff] %v1616
  %1621 = vst [vmem:[%s10 + $0x18] sm:$0xff] %v1617
  %v1622 = vld [vmem:[%s10] ss:$2 sm:$0xff]
  %s1623 = scalar_lea.vmem %s10, 16
  %v1624 = vld [vmem:[%s1623] ss:$2 sm:$0xff]
  %s1625 = scalar_lea.vmem %s10, 1
  %v1626 = vld [vmem:[%s1625] ss:$2 sm:$0xff]
  %s1627 = scalar_lea.vmem %s10, 17
  %v1628 = vld [vmem:[%s1627] ss:$2 sm:$0xff]
  %v1629 = vmax.f32 %v1622, %v1626
  %v1630 = vmax.f32 %v1624, %v1628
  %1633 = vrot.lane.b32.xlu0 %v1629, 120
  %v1634 = vpop.permute.xlu0 %1633
  %1635 = vrot.lane.b32.xlu0 %v1630, 120
  %v1636 = vpop.permute.xlu0 %1635
  %v1639 = vmax.f32 %v1629, %v1634
  %v1640 = vmax.f32 %v1630, %v1636
  %vm1641 = vcmask 64512
  %1642 = vst.msk [vmem:[%s11] sm:$0xff] %vm1641, %v1639
  %1643 = vst.msk [vmem:[%s11 + $0x8] sm:$0xff] %vm1641, %v1640
  %1646 = vrot.lane.b32.xlu0 %v1639, 120
  %v1647 = vpop.permute.xlu0 %1646
  %1648 = vrot.lane.b32.xlu0 %v1640, 120
  %v1649 = vpop.permute.xlu0 %1648
  %vm1652 = vcmask 130112
  %1653 = vst.msk [vmem:[%s11] sm:$0xff] %vm1652, %v1647
  %1654 = vst.msk [vmem:[%s11 + $0x8] sm:$0xff] %vm1652, %v1649
  %1655 = vrot.lane.b32.xlu0 %v1639, 112
  %v1656 = vpop.permute.xlu0 %1655
  %1657 = vrot.lane.b32.xlu0 %v1640, 112
  %v1658 = vpop.permute.xlu0 %1657
  %vm1661 = vcmask 195712
  %1662 = vst.msk [vmem:[%s11] sm:$0xff] %vm1661, %v1656
  %1663 = vst.msk [vmem:[%s11 + $0x8] sm:$0xff] %vm1661, %v1658
  %1664 = vrot.lane.b32.xlu0 %v1639, 104
  %v1665 = vpop.permute.xlu0 %1664
  %1666 = vrot.lane.b32.xlu0 %v1640, 104
  %v1667 = vpop.permute.xlu0 %1666
  %vm1670 = vcmask 261312
  %1671 = vst.msk [vmem:[%s11] sm:$0xff] %vm1670, %v1665
  %1672 = vst.msk [vmem:[%s11 + $0x8] sm:$0xff] %vm1670, %v1667
  %1673 = vrot.lane.b32.xlu0 %v1639, 96
  %v1674 = vpop.permute.xlu0 %1673
  %1675 = vrot.lane.b32.xlu0 %v1640, 96
  %v1676 = vpop.permute.xlu0 %1675
  %vm1679 = vcmask 326912
  %1680 = vst.msk [vmem:[%s11] sm:$0xff] %vm1679, %v1674
  %1681 = vst.msk [vmem:[%s11 + $0x8] sm:$0xff] %vm1679, %v1676
  %1682 = vrot.lane.b32.xlu0 %v1639, 88
  %v1683 = vpop.permute.xlu0 %1682
  %1684 = vrot.lane.b32.xlu0 %v1640, 88
  %v1685 = vpop.permute.xlu0 %1684
  %vm1688 = vcmask 392512
  %1689 = vst.msk [vmem:[%s11] sm:$0xff] %vm1688, %v1683
  %1690 = vst.msk [vmem:[%s11 + $0x8] sm:$0xff] %vm1688, %v1685
  %1691 = vrot.lane.b32.xlu0 %v1639, 80
  %v1692 = vpop.permute.xlu0 %1691
  %1693 = vrot.lane.b32.xlu0 %v1640, 80
  %v1694 = vpop.permute.xlu0 %1693
  %vm1697 = vcmask 458112
  %1698 = vst.msk [vmem:[%s11] sm:$0xff] %vm1697, %v1692
  %1699 = vst.msk [vmem:[%s11 + $0x8] sm:$0xff] %vm1697, %v1694
  %1700 = vrot.lane.b32.xlu0 %v1639, 72
  %v1701 = vpop.permute.xlu0 %1700
  %1702 = vrot.lane.b32.xlu0 %v1640, 72
  %v1703 = vpop.permute.xlu0 %1702
  %vm1706 = vcmask 523712
  %1707 = vst.msk [vmem:[%s11] sm:$0xff] %vm1706, %v1701
  %1708 = vst.msk [vmem:[%s11 + $0x8] sm:$0xff] %vm1706, %v1703
  // Predicated region
  $region42: #{encoder_forward.1} parent=0 // pred_check
    _
  $region43: #{encoder_forward.1} parent=0 // pred_check_branch
    %1710 = sbr.rel (0) target = $region45
  $region44: #{encoder_forward.1} parent=0 // pred_region
    _
  $region45: #{encoder_forward.1} parent=0 // pred_fallthru
    _
  // Predicated region
  $region46: #{encoder_forward.1} parent=0 // pred_check
    _
  $region47: #{encoder_forward.1} parent=0 // pred_check_branch
    %1712 = sbr.rel (0) target = $region49
  $region48: #{encoder_forward.1} parent=0 // pred_region
    _
  $region49: #{encoder_forward.1} parent=0 // pred_fallthru
    _
  // Predicated region
  $region50: #{encoder_forward.1} parent=0 // pred_check
    _
  $region51: #{encoder_forward.1} parent=0 // pred_check_branch
    %1714 = sbr.rel (0) target = $region53
  $region52: #{encoder_forward.1} parent=0 // pred_region
    _
  $region53: #{encoder_forward.1} parent=0 // pred_fallthru
    _
  // Predicated region
  $region54: #{encoder_forward.1} parent=0 // pred_check
    _
  $region55: #{encoder_forward.1} parent=0 // pred_check_branch
    %1716 = sbr.rel (0) target = $region57
  $region56: #{encoder_forward.1} parent=0 // pred_region
    _
  $region57: #{encoder_forward.1} parent=0 // pred_fallthru
    _

</llo_original>
